<compile_context>
chip_gen: v7x
topology: tpu7x:2x2x1
jax: 0.10.0
libtpu: 0.0.40
codegen_flags: <defaults>
</compile_context>

<pallas_src>
import math
import functools

import jax
import jax.numpy as jnp
from jax import lax
from jax.experimental import pallas as pl
from jax.experimental.pallas import tpu as pltpu


# -----------------------------------------------------------------------------
# Kernel
# -----------------------------------------------------------------------------
def _rotate_gather_kernel(kband_ref, qsrc_ref, iota_ref, x_ref, o_ref, acc_ref,
                          *, tile_q, x_resident, mm_dtype, mm_precision):
    """Band-restricted one-hot gather-matmul.

    kband_ref: SMEM (2, num_p) int32 -- [kmin, kmax] contributing source block per output tile.
    qsrc_ref:  VMEM (1, TILE_P) int32 -- flattened nearest-source index per output pixel (-1 = OOB).
    iota_ref:  VMEM (TILE_Q, TILE_P) int32 -- sublane iota, built once in the wrapper.
    x_ref:     VMEM (num_k|1, R_pad, TILE_Q) -- flattened image planes (resident or streamed).
    o_ref:     VMEM (R_pad, TILE_P) -- rotated output tile.
    acc_ref:   VMEM (R_pad, TILE_P) f32 scratch accumulator.
    """
    j = pl.program_id(0)   # output-pixel tile
    k = pl.program_id(1)   # source-pixel block (contraction axis)

    @pl.when(k == 0)
    def _init():
        acc_ref[...] = jnp.zeros_like(acc_ref)

    # Band restriction: only source blocks [kmin, kmax] can feed this output tile.
    @pl.when((k >= kband_ref[0, j]) & (k <= kband_ref[1, j]))
    def _contract():
        # sel[q, p] = 1 iff flattened source pixel (k*TILE_Q + q) feeds output pixel p.
        # OOB / padded output pixels carry qsrc == -1 and never match -> fill value 0.
        q_rel = qsrc_ref[...] - k * tile_q                      # (1, TILE_P) int32
        sel = (iota_ref[...] == q_rel).astype(mm_dtype)         # (TILE_Q, TILE_P)
        xk = x_ref[k] if x_resident else x_ref[0]               # (R_pad, TILE_Q)
        acc_ref[...] += jnp.dot(xk.astype(mm_dtype), sel,
                                precision=mm_precision,
                                preferred_element_type=jnp.float32)

    @pl.when(k == pl.num_programs(1) - 1)
    def _finalize():
        o_ref[...] = acc_ref[...].astype(o_ref.dtype)


# -----------------------------------------------------------------------------
# Wrapper helpers
# -----------------------------------------------------------------------------
def _round_up(a, b):
    return (a + b - 1) // b * b


def _chip_vmem_plan():
    """Per-generation (budget_for_working_set, vmem_limit_bytes).

    pltpu.get_tpu_info() is a trace-time query, so the device kind string is used here.
    v7x: 64 MiB physical / 32 MiB scoped default.  v4/v5e/v5p/v6e: 128 MiB physical.
    Unknown chips keep the scoped default (vmem_limit_bytes=None).
    """
    try:
        kind = jax.devices()[0].device_kind.lower()
    except Exception:
        kind = ""
    if "v7" in kind:
        return 20 * 1024 * 1024, 32 * 1024 * 1024
    if any(t in kind for t in ("v6", "v5e", "v5 lite", "v5p", "v4")):
        return 48 * 1024 * 1024, 64 * 1024 * 1024
    return 14 * 1024 * 1024, None


def _nearest_src_index(cos_sin, H, W):
    """Per output pixel p (row-major): flattened nearest-neighbour source pixel index under
    the inverse rotation, or -1 if it falls outside the image (fill=0).  Pure JAX, O(H*W);
    matches torchvision F.rotate NEAREST / expand=False / center=None (grid_sample,
    align_corners=False, round-half-to-even, zero padding)."""
    c, s = cos_sin[0], cos_sin[1]
    ox = jnp.tile(jnp.arange(W, dtype=jnp.float32), H)
    oy = jnp.repeat(jnp.arange(H, dtype=jnp.float32), W)
    cx, cy = (W - 1) * 0.5, (H - 1) * 0.5
    xr, yr = ox - cx, oy - cy
    ix = c * xr + s * yr + cx
    iy = -s * xr + c * yr + cy
    sx = jnp.round(ix)   # round half to even, like grid_sample's nearbyint
    sy = jnp.round(iy)
    valid = (sx >= 0.0) & (sx <= W - 1) & (sy >= 0.0) & (sy <= H - 1)
    q = sy.astype(jnp.int32) * W + sx.astype(jnp.int32)
    return jnp.where(valid, q, -1).reshape(1, H * W)


def _rotate_planes(x_flat, q_src, N):
    """Rotate R flattened planes (R, N) with the precomputed source-index table (1, N)."""
    R = x_flat.shape[0]
    dtype = x_flat.dtype
    itemsize = jnp.dtype(dtype).itemsize

    # Sublane-pad the fused plane count -> full MXU LHS tiles and unmasked output stores.
    r_mult = 16 if itemsize == 2 else 8
    r_pad = _round_up(max(R, 1), r_mult)

    budget, vmem_limit = _chip_vmem_plan()

    # Lane / contraction tiles: multiples of 256 (full 2x256x256 MXU on v6e/v7x; two
    # 128-wide tiles on v5e).  No forced >=2-step split: on single-TC chips that was pure
    # per-step overhead; large images naturally produce many tiles for v7x's two cores.
    tile_p = min(512, _round_up(N, 256))
    tile_q = min(512, _round_up(N, 256))

    n_out = _round_up(N, tile_p)
    n_src = _round_up(N, tile_q)
    num_p = n_out // tile_p
    num_k = n_src // tile_q

    # --- VMEM accounting (conservative: counts Pallas' default double buffers) ----------
    slab = tile_q * tile_p * 4
    fixed = (3 * slab                                  # sel + iota/compare temporaries
             + 2 * tile_q * tile_p * 4                 # resident iota input (2 buffers)
             + 2 * tile_p * 4                          # qsrc tile (2 buffers)
             + 2 * r_pad * tile_p * itemsize           # output tile (2 buffers)
             + r_pad * tile_p * 4                      # accumulator scratch
             + r_pad * tile_q * 4)                     # cast copy of the x slice
    x_bytes = num_k * r_pad * tile_q * itemsize
    x_resident = (fixed + 2 * x_bytes) <= budget       # resident => single HBM fetch

    # Pad planes: (R, N) -> (num_k, r_pad, tile_q); padded source pixels are never selected.
    xp = jnp.zeros((r_pad, n_src), dtype).at[:R, :N].set(x_flat)
    x3 = xp.reshape(r_pad, num_k, tile_q).transpose(1, 0, 2)

    # Pad the per-output-pixel source index table; padded output pixels marked OOB (-1).
    qp = jnp.full((1, n_out), -1, jnp.int32).at[:, :N].set(q_src)

    # Per-output-tile contributing source-block band [kmin, kmax] (scalar prefetch -> SMEM).
    qb = qp.reshape(num_p, tile_p)
    qblk = qb // tile_q
    valid = qb >= 0
    kmin = jnp.min(jnp.where(valid, qblk, num_k), axis=1)   # empty band if no valid pixel
    kmax = jnp.max(jnp.where(valid, qblk, -1), axis=1)
    kband = jnp.stack([kmin, kmax]).astype(jnp.int32)       # (2, num_p): long axis last

    # Iota built once in the wrapper, passed as a resident input (not rebuilt per step).
    iota = lax.broadcasted_iota(jnp.int32, (tile_q, tile_p), 0)

    if dtype == jnp.bfloat16:
        mm_dtype, mm_precision = jnp.bfloat16, None          # 0/1 selection is exact in bf16
    else:
        mm_dtype, mm_precision = jnp.float32, lax.Precision.HIGHEST   # exact f32 gather

    kernel = functools.partial(_rotate_gather_kernel, tile_q=tile_q,
                               x_resident=x_resident, mm_dtype=mm_dtype,
                               mm_precision=mm_precision)

    if x_resident:
        x_spec = pl.BlockSpec((num_k, r_pad, tile_q), lambda j, k, kb: (0, 0, 0))
    else:
        x_spec = pl.BlockSpec((1, r_pad, tile_q), lambda j, k, kb: (k, 0, 0))

    out = pl.pallas_call(
        kernel,
        out_shape=jax.ShapeDtypeStruct((r_pad, n_out), dtype),
        grid_spec=pltpu.PrefetchScalarGridSpec(
            num_scalar_prefetch=1,
            grid=(num_p, num_k),
            in_specs=[
                pl.BlockSpec((1, tile_p), lambda j, k, kb: (0, j)),        # qsrc (lane-dense)
                pl.BlockSpec((tile_q, tile_p), lambda j, k, kb: (0, 0)),   # iota (resident)
                x_spec,                                                    # image planes
            ],
            out_specs=pl.BlockSpec((r_pad, tile_p), lambda j, k, kb: (0, j)),
            scratch_shapes=[pltpu.VMEM((r_pad, tile_p), jnp.float32)],
        ),
        compiler_params=pltpu.CompilerParams(
            dimension_semantics=("parallel", "arbitrary"),
            vmem_limit_bytes=vmem_limit,
        ),
    )(kband, qp, iota, x3)
    return out[:R, :N]


# -----------------------------------------------------------------------------
# Public forward pass
# -----------------------------------------------------------------------------
def random_rotate(img, seg_map, degrees, key):
    """RandomRotate forward: sample angle ~ U(degrees[0], degrees[1]) and rotate both
    `img` and `seg_map` (nearest, expand=False, center=None, fill=0)."""
    if isinstance(degrees, (int, float)):
        lo, hi = -float(degrees), float(degrees)
    else:
        lo, hi = float(degrees[0]), float(degrees[1])
    angle = jax.random.uniform(key, (), jnp.float32, lo, hi)
    rot = -angle * (math.pi / 180.0)       # torchvision feeds -angle into the inverse matrix
    cos_sin = jnp.stack([jnp.cos(rot), jnp.sin(rot)]).astype(jnp.float32)

    H, W = img.shape[-2], img.shape[-1]
    assert seg_map.shape[-2:] == (H, W), "img and seg_map must share spatial dims"
    N = H * W
    q_src = _nearest_src_index(cos_sin, H, W)

    img_flat = img.reshape(-1, N)
    seg_flat = seg_map.reshape(-1, N)

    if img.dtype == seg_map.dtype:
        # Fuse both tensors: the selection slab is built once and the MXU LHS has more rows.
        fused = jnp.concatenate([img_flat, seg_flat], axis=0)
        out = _rotate_planes(fused, q_src, N)
        r_img = img_flat.shape[0]
        return out[:r_img].reshape(img.shape), out[r_img:].reshape(seg_map.shape)
    out_img = _rotate_planes(img_flat, q_src, N).reshape(img.shape)
    out_seg = _rotate_planes(seg_flat, q_src, N).reshape(seg_map.shape)
    return out_img, out_seg


# -----------------------------------------------------------------------------
# Pure-JAX reference (sanity check)
# -----------------------------------------------------------------------------
def _reference_rotate(x, cos_sin, H, W):
    c, s = cos_sin[0], cos_sin[1]
    j = jnp.arange(W, dtype=jnp.float32)[None, :]
    i = jnp.arange(H, dtype=jnp.float32)[:, None]
    cx, cy = (W - 1) * 0.5, (H - 1) * 0.5
    xr, yr = j - cx, i - cy
    ix = c * xr + s * yr + cx
    iy = -s * xr + c * yr + cy
    sx = jnp.round(ix).astype(jnp.int32)
    sy = jnp.round(iy).astype(jnp.int32)
    valid = (sx >= 0) & (sx < W) & (sy >= 0) & (sy < H)
    gathered = x[..., jnp.clip(sy, 0, H - 1), jnp.clip(sx, 0, W - 1)]
    return jnp.where(valid, gathered, 0.0)


if __name__ == "__main__":
    key = jax.random.PRNGKey(0)
    k_img, k_map, k_angle = jax.random.split(key, 3)

    # Small NCHW inputs: image (B=2, C=4, 16, 16), segmentation map (B=2, C=1, 16, 16)
    img = jax.random.normal(k_img, (2, 4, 16, 16), jnp.float32)
    seg = jax.random.uniform(k_map, (2, 1, 16, 16), jnp.float32)

    degrees = (-30.0, 30.0)
    out_img, out_map = random_rotate(img, seg, degrees, k_angle)
    jax.block_until_ready((out_img, out_map))

    # Sanity check vs. pure-JAX nearest rotation with identical math.
    angle = jax.random.uniform(k_angle, (), jnp.float32, degrees[0], degrees[1])
    rot = -angle * (math.pi / 180.0)
    cos_sin = jnp.stack([jnp.cos(rot), jnp.sin(rot)]).astype(jnp.float32)
    ref_img = _reference_rotate(img, cos_sin, 16, 16)
    ref_map = _reference_rotate(seg, cos_sin, 16, 16)
    assert out_img.shape == img.shape and out_map.shape == seg.shape
    assert jnp.allclose(out_img, ref_img, atol=1e-5)
    assert jnp.allclose(out_map, ref_map, atol=1e-5)

    print("KERNEL_OK")
</pallas_src>

<mosaic_0001>
module attributes {stable_mosaic.version = 11 : i64} {
  func.func @_rotate_gather_kernel(%arg0: i32, %arg1: i32, %arg2: memref<2x1xi32, #tpu.memory_space<smem>>, %arg3: memref<1x256xi32, #tpu.memory_space<vmem>>, %arg4: memref<256x256xi32, #tpu.memory_space<vmem>>, %arg5: memref<1x16x256xf32, #tpu.memory_space<vmem>>, %arg6: memref<16x256xf32, #tpu.memory_space<vmem>>, %arg7: memref<16x256xf32, #tpu.memory_space<vmem>>) attributes {dimension_semantics = [#tpu.dimension_semantics<parallel>, #tpu.dimension_semantics<arbitrary>], iteration_bounds = array<i64: 1, 1>, scalar_prefetch = 1 : i64, scratch_operands = 1 : i64, tpu.core_type = #tpu.core_type<tc>, window_params = [{transform_indices = @transform_0, window_bounds = array<i64: 1, 256>}, {pipeline_mode = #tpu.pipeline_mode<synchronous>, transform_indices = @transform_1, window_bounds = array<i64: 256, 256>}, {pipeline_mode = #tpu.pipeline_mode<synchronous>, transform_indices = @transform_2, window_bounds = array<i64: 1, 16, 256>}, {transform_indices = @transform_3, window_bounds = array<i64: 16, 256>}]} {
    %c0_i32 = arith.constant 0 : i32
    %0 = arith.cmpi eq, %arg1, %c0_i32 : i32
    %1 = arith.extui %0 : i1 to i32
    %c0_i32_0 = arith.constant 0 : i32
    %2 = arith.cmpi ne, %1, %c0_i32_0 : i32
    scf.if %2 {
      %cst = arith.constant 0.000000e+00 : f32
      %15 = vector.broadcast %cst : f32 to vector<16x256xf32>
      %c0_4 = arith.constant 0 : index
      %c0_5 = arith.constant 0 : index
      %16 = vector.load %arg7[%c0_4, %c0_5] : memref<16x256xf32, #tpu.memory_space<vmem>>, vector<16x256xf32>
      tpu.vector_store %arg7[%c0_4, %c0_5], %15 {strides = array<i32>} : memref<16x256xf32, #tpu.memory_space<vmem>>, vector<16x256xf32>,
    } else {
    }
    %c0 = arith.constant 0 : index
    %3 = arith.index_cast %arg0 : i32 to index
    %4 = memref.load %arg2[%c0, %3] : memref<2x1xi32, #tpu.memory_space<smem>>
    %5 = arith.cmpi sge, %arg1, %4 : i32
    %c1 = arith.constant 1 : index
    %6 = arith.index_cast %arg0 : i32 to index
    %7 = memref.load %arg2[%c1, %6] : memref<2x1xi32, #tpu.memory_space<smem>>
    %8 = arith.cmpi sle, %arg1, %7 : i32
    %9 = arith.andi %5, %8 : i1
    %10 = arith.extui %9 : i1 to i32
    %c0_i32_1 = arith.constant 0 : i32
    %11 = arith.cmpi ne, %10, %c0_i32_1 : i32
    scf.if %11 {
      %c0_4 = arith.constant 0 : index
      %c0_5 = arith.constant 0 : index
      %15 = vector.load %arg3[%c0_4, %c0_5] : memref<1x256xi32, #tpu.memory_space<vmem>>, vector<1x256xi32>
      %c256_i32 = arith.constant 256 : i32
      %16 = arith.muli %arg1, %c256_i32 : i32
      %17 = vector.broadcast %16 : i32 to vector<1x256xi32>
      %18 = arith.subi %15, %17 : vector<1x256xi32>
      %c0_6 = arith.constant 0 : index
      %c0_7 = arith.constant 0 : index
      %19 = vector.load %arg4[%c0_6, %c0_7] : memref<256x256xi32, #tpu.memory_space<vmem>>, vector<256x256xi32>
      %20 = vector.broadcast %18 : vector<1x256xi32> to vector<256x256xi32>
      %21 = arith.cmpi eq, %19, %20 : vector<256x256xi32>
      %22 = arith.extui %21 : vector<256x256xi1> to vector<256x256xi32>
      %23 = arith.sitofp %22 : vector<256x256xi32> to vector<256x256xf32>
      %24 = arith.index_cast %arg1 : i32 to index
      %c0_8 = arith.constant 0 : index
      %c0_9 = arith.constant 0 : index
      %25 = vector.load %arg5[%24, %c0_8, %c0_9] : memref<1x16x256xf32, #tpu.memory_space<vmem>>, vector<1x16x256xf32>
      %26 = vector.shape_cast %25 : vector<1x16x256xf32> to vector<16x256xf32>
      %c0_10 = arith.constant 0 : index
      %c0_11 = arith.constant 0 : index
      %27 = vector.load %arg7[%c0_10, %c0_11] : memref<16x256xf32, #tpu.memory_space<vmem>>, vector<16x256xf32>
      %cst = arith.constant dense<0.000000e+00> : vector<16x256xf32>
      %28 = tpu.matmul %26, %23, %cst {dimension_numbers = #tpu.dot_dimension_numbers<[1], [0], [0], [1], [0, 0, 1, 1], [], []>, precision = #tpu.contract_precision<fp32>} : vector<16x256xf32>, vector<256x256xf32>, vector<16x256xf32> -> vector<16x256xf32>
      %29 = arith.addf %27, %28 : vector<16x256xf32>
      %c0_12 = arith.constant 0 : index
      %c0_13 = arith.constant 0 : index
      %30 = vector.load %arg7[%c0_12, %c0_13] : memref<16x256xf32, #tpu.memory_space<vmem>>, vector<16x256xf32>
      tpu.vector_store %arg7[%c0_12, %c0_13], %29 {strides = array<i32>} : memref<16x256xf32, #tpu.memory_space<vmem>>, vector<16x256xf32>,
    } else {
    }
    %c0_i32_2 = arith.constant 0 : i32
    %12 = arith.cmpi eq, %arg1, %c0_i32_2 : i32
    %13 = arith.extui %12 : i1 to i32
    %c0_i32_3 = arith.constant 0 : i32
    %14 = arith.cmpi ne, %13, %c0_i32_3 : i32
    scf.if %14 {
      %c0_4 = arith.constant 0 : index
      %c0_5 = arith.constant 0 : index
      %15 = vector.load %arg7[%c0_4, %c0_5] : memref<16x256xf32, #tpu.memory_space<vmem>>, vector<16x256xf32>
      %c0_6 = arith.constant 0 : index
      %c0_7 = arith.constant 0 : index
      %16 = vector.load %arg6[%c0_6, %c0_7] : memref<16x256xf32, #tpu.memory_space<vmem>>, vector<16x256xf32>
      tpu.vector_store %arg6[%c0_6, %c0_7], %15 {strides = array<i32>} : memref<16x256xf32, #tpu.memory_space<vmem>>, vector<16x256xf32>,
    } else {
    }
    return
  }
  func.func @transform_0(%arg0: i32, %arg1: i32, %arg2: memref<2x1xi32, #tpu.memory_space<smem>>) -> (i32, i32) {
    %c0_i32 = arith.constant 0 : i32
    %c0_i32_0 = arith.constant 0 : i32
    return %c0_i32, %arg0 : i32, i32
  }
  func.func @transform_1(%arg0: i32, %arg1: i32, %arg2: memref<2x1xi32, #tpu.memory_space<smem>>) -> (i32, i32) {
    %c0_i32 = arith.constant 0 : i32
    %c0_i32_0 = arith.constant 0 : i32
    %c0_i32_1 = arith.constant 0 : i32
    return %c0_i32, %c0_i32_0 : i32, i32
  }
  func.func @transform_2(%arg0: i32, %arg1: i32, %arg2: memref<2x1xi32, #tpu.memory_space<smem>>) -> (i32, i32, i32) {
    %c0_i32 = arith.constant 0 : i32
    %c0_i32_0 = arith.constant 0 : i32
    %c0_i32_1 = arith.constant 0 : i32
    %c0_i32_2 = arith.constant 0 : i32
    return %c0_i32, %c0_i32_0, %c0_i32_1 : i32, i32, i32
  }
  func.func @transform_3(%arg0: i32, %arg1: i32, %arg2: memref<2x1xi32, #tpu.memory_space<smem>>) -> (i32, i32) {
    %c0_i32 = arith.constant 0 : i32
    %c0_i32_0 = arith.constant 0 : i32
    return %c0_i32, %arg0 : i32, i32
  }
}

</mosaic_0001>

<llo_original>
// kernel: tpu_custom_call.1
$region0: #{tpu_custom_call.1}
  #allocation0 [shape = 'u32[]', space=smem, size = 0x4, offset = 0x4, fixed_abs, tag = 'smem constant byte address 0x4 - core index']
  #allocation1 [shape = 'u32[144,128]{1,0:T(1,128)}', space=vmem, size = 0x12000, scoped, tag = 'internal scratch']
  #allocation2 [shape = 'f32[16,256]{1,0:T(8,128)}', space=vmem, size = 0x4000, scoped, tag = 'scratch operand']
  #allocation3 [shape = 's32[1]{0}', space=sflag, size = 0x4, scoped, tag = 'scoped memory for tpu_custom_call.1']
  #allocation4 [shape = 'u8[1024]{0}', space=smem, size = 0x400, scoped, tag = 'prefetched SMEM operand 0']
  %s0 = inlined_call_operand.vmem [shape: s32[2,1], index: 0, kind: input, shape index: {}]
  %s1 = inlined_call_operand.vmem [shape: s32[1,256], index: 1, kind: input, shape index: {}]
  %s2 = inlined_call_operand.hbm [shape: s32[256,256], index: 2, kind: input, shape index: {}]
  %s3 = inlined_call_operand.hbm [shape: f32[1,16,256], index: 3, kind: input, shape index: {}]
  %s4 = inlined_call_operand.hbm [shape: f32[16,256], index: 4, kind: output, shape index: {}]
  %s5 = sld [smem:[#allocation0]]
  $region42: #{tpu_custom_call.1} parent=0
    _
  %s7 = ssub.s32 1, %s5
  %s8 = scalar_select 0, %s7, %s5
  %s9 = sshll.u32 %s0, 4
  %s10 = int_to_ptr.vmem [resolvable:$true] %s9
  %12 = dma.vmem_to_smem %s10, 32, [#allocation4], [#allocation3]
  %13 = dma.done [#allocation3], 32
  %14 = sfence
  $region1: #{tpu_custom_call.1} parent=0
    #allocation5 [shape = 'u8[262144]{0}', space=vmem, size = 0x40000, scoped, tag = 'input window, operand 2, single buffered']
    #allocation6 [shape = 's32[1]{0}', space=sflag, size = 0x4, scoped, tag = 'scoped memory for tpu_custom_call.1']
    #allocation7 [shape = 's32[1]{0}', space=sflag, size = 0x4, scoped, tag = 'scoped memory for tpu_custom_call.1']
    #allocation8 [shape = 'u8[16384]{0}', space=vmem, size = 0x4000, scoped, tag = 'input window, operand 3, single buffered']
    #allocation9 [shape = 's32[1]{0}', space=sflag, size = 0x4, scoped, tag = 'scoped memory for tpu_custom_call.1']
    #allocation10 [shape = 'u8[16384]{0}', space=vmem, size = 0x4000, scoped, tag = 'output window, operand 0, single buffered']
    %15 = vsyncpa [#allocation6], 0
    %16 = vsyncpa [#allocation9], 0
    %17 = vsyncpa [#allocation7], 0
    // Predicated region
    $region2: #{tpu_custom_call.1} parent=1 // pred_check
      _
    $region3: #{tpu_custom_call.1} parent=1 // pred_check_branch
      %19 = sbr.rel (0) target = $region5
    $region4: #{tpu_custom_call.1} parent=1 // pred_region
      _
    $region5: #{tpu_custom_call.1} parent=1 // pred_fallthru
      _
    // Predicated region
    $region6: #{tpu_custom_call.1} parent=1 // pred_check
      _
    $region7: #{tpu_custom_call.1} parent=1 // pred_check_branch
      %21 = sbr.rel (0) target = $region9
    $region8: #{tpu_custom_call.1} parent=1 // pred_region
      %s23 = ssub.s32 8192, 8192
      %24 = vsyncadd [#allocation6], %s23
      %s25 = sshll.u32 [#allocation5], 4
      %s26 = int_to_ptr.vmem [resolvable:$true] %s25
      %31 = dma.hbm_to_vmem [thread:$0]  %s2, 8192, %s26, [#allocation6], 256, 256, 16
    $region9: #{tpu_custom_call.1} parent=1 // pred_fallthru
      _
    // Predicated region
    $region10: #{tpu_custom_call.1} parent=1 // pred_check
      _
    $region11: #{tpu_custom_call.1} parent=1 // pred_check_branch
      %33 = sbr.rel (0) target = $region13
    $region12: #{tpu_custom_call.1} parent=1 // pred_region
      %s35 = ssub.s32 512, 512
      %36 = vsyncadd [#allocation9], %s35
      %s37 = sshll.u32 [#allocation8], 4
      %s38 = int_to_ptr.vmem [resolvable:$true] %s37
      %43 = dma.hbm_to_vmem [thread:$0]  %s3, 512, %s38, [#allocation9], 256, 256, 16
    $region13: #{tpu_custom_call.1} parent=1 // pred_fallthru
      _
    // Predicated region
    $region14: #{tpu_custom_call.1} parent=1 // pred_check
      _
    $region15: #{tpu_custom_call.1} parent=1 // pred_check_branch
      %45 = sbr.rel (0) target = $region17
    $region16: #{tpu_custom_call.1} parent=1 // pred_region
      %46 = dma.done [#allocation6], 8192
    $region17: #{tpu_custom_call.1} parent=1 // pred_fallthru
      _
    // Predicated region
    $region18: #{tpu_custom_call.1} parent=1 // pred_check
      _
    $region19: #{tpu_custom_call.1} parent=1 // pred_check_branch
      %48 = sbr.rel (0) target = $region21
    $region20: #{tpu_custom_call.1} parent=1 // pred_region
      %49 = dma.done [#allocation9], 512
    $region21: #{tpu_custom_call.1} parent=1 // pred_fallthru
      _
    %p50 = scmp.eq.s32.totalorder 0, 0
    // Predicated region
    $region22: #{tpu_custom_call.1} parent=1 // pred_check
      %p51 = pneg %p50
    $region23: #{tpu_custom_call.1} parent=1 // pred_check_branch
      %53 = sbr.rel (%p51) target = $region25
    $region24: #{tpu_custom_call.1} parent=1 // pred_region
      %54 = vst [vmem:[#allocation2] sm:$0xff] 0.0
      %55 = vst [vmem:[#allocation2 + $0x8] sm:$0xff] 0.0
      %56 = vst [vmem:[#allocation2 + $0x10] sm:$0xff] 0.0
      %57 = vst [vmem:[#allocation2 + $0x18] sm:$0xff] 0.0
    $region25: #{tpu_custom_call.1} parent=1 // pred_fallthru
      _
    %s58 = sld [smem:[#allocation4]]
    %p59 = scmp.ge.s32.totalorder 0, %s58
    %s60 = sadd.s32 0, 1
    %s61 = smul.u32 %s60, 128
    %s62 = sadd.s32 %s61, 0
    %s63 = sld [smem:[#allocation4 + %s62]]
    %p64 = scmp.le.s32.totalorder 0, %s63
    %p65 = pnand %p59, %p64
    %p66 = pneg %p65
    // Predicated region
    $region26: #{tpu_custom_call.1} parent=1 // pred_check
      _
    $region27: #{tpu_custom_call.1} parent=1 // pred_check_branch
      %68 = sbr.rel (%p65) target = $region29
    $region28: #{tpu_custom_call.1} parent=1 // pred_region
      %v69 = vld [vmem:[%s1] sm:$0x3]
      %s70 = smul.u32 0, 256
      %v71 = vstv %s70
      %v72 = vsub.s32 %v69, %v71
      %v73 = vld [vmem:[#allocation5] sm:$0xff]
      %v74 = vld [vmem:[#allocation5 + $0x8] sm:$0xff]
      %v75 = vld [vmem:[#allocation5 + $0x10] sm:$0xff]
      %v76 = vld [vmem:[#allocation5 + $0x18] sm:$0xff]
      %v77 = vld [vmem:[#allocation5 + $0x20] sm:$0xff]
      %v78 = vld [vmem:[#allocation5 + $0x28] sm:$0xff]
      %v79 = vld [vmem:[#allocation5 + $0x30] sm:$0xff]
      %v80 = vld [vmem:[#allocation5 + $0x38] sm:$0xff]
      %v81 = vld [vmem:[#allocation5 + $0x40] sm:$0xff]
      %v82 = vld [vmem:[#allocation5 + $0x48] sm:$0xff]
      %v83 = vld [vmem:[#allocation5 + $0x50] sm:$0xff]
      %v84 = vld [vmem:[#allocation5 + $0x58] sm:$0xff]
      %v85 = vld [vmem:[#allocation5 + $0x60] sm:$0xff]
      %v86 = vld [vmem:[#allocation5 + $0x68] sm:$0xff]
      %v87 = vld [vmem:[#allocation5 + $0x70] sm:$0xff]
      %v88 = vld [vmem:[#allocation5 + $0x78] sm:$0xff]
      %v89 = vld [vmem:[#allocation5 + $0x80] sm:$0xff]
      %v90 = vld [vmem:[#allocation5 + $0x88] sm:$0xff]
      %v91 = vld [vmem:[#allocation5 + $0x90] sm:$0xff]
      %v92 = vld [vmem:[#allocation5 + $0x98] sm:$0xff]
      %v93 = vld [vmem:[#allocation5 + $0xa0] sm:$0xff]
      %v94 = vld [vmem:[#allocation5 + $0xa8] sm:$0xff]
      %v95 = vld [vmem:[#allocation5 + $0xb0] sm:$0xff]
      %v96 = vld [vmem:[#allocation5 + $0xb8] sm:$0xff]
      %v97 = vld [vmem:[#allocation5 + $0xc0] sm:$0xff]
      %v98 = vld [vmem:[#allocation5 + $0xc8] sm:$0xff]
      %v99 = vld [vmem:[#allocation5 + $0xd0] sm:$0xff]
      %v100 = vld [vmem:[#allocation5 + $0xd8] sm:$0xff]
      %v101 = vld [vmem:[#allocation5 + $0xe0] sm:$0xff]
      %v102 = vld [vmem:[#allocation5 + $0xe8] sm:$0xff]
      %v103 = vld [vmem:[#allocation5 + $0xf0] sm:$0xff]
      %v104 = vld [vmem:[#allocation5 + $0xf8] sm:$0xff]
      %v105 = vld [vmem:[#allocation5 + $0x100] sm:$0xff]
      %v106 = vld [vmem:[#allocation5 + $0x108] sm:$0xff]
      %v107 = vld [vmem:[#allocation5 + $0x110] sm:$0xff]
      %v108 = vld [vmem:[#allocation5 + $0x118] sm:$0xff]
      %v109 = vld [vmem:[#allocation5 + $0x120] sm:$0xff]
      %v110 = vld [vmem:[#allocation5 + $0x128] sm:$0xff]
      %v111 = vld [vmem:[#allocation5 + $0x130] sm:$0xff]
      %v112 = vld [vmem:[#allocation5 + $0x138] sm:$0xff]
      %v113 = vld [vmem:[#allocation5 + $0x140] sm:$0xff]
      %v114 = vld [vmem:[#allocation5 + $0x148] sm:$0xff]
      %v115 = vld [vmem:[#allocation5 + $0x150] sm:$0xff]
      %v116 = vld [vmem:[#allocation5 + $0x158] sm:$0xff]
      %v117 = vld [vmem:[#allocation5 + $0x160] sm:$0xff]
      %v118 = vld [vmem:[#allocation5 + $0x168] sm:$0xff]
      %v119 = vld [vmem:[#allocation5 + $0x170] sm:$0xff]
      %v120 = vld [vmem:[#allocation5 + $0x178] sm:$0xff]
      %v121 = vld [vmem:[#allocation5 + $0x180] sm:$0xff]
      %v122 = vld [vmem:[#allocation5 + $0x188] sm:$0xff]
      %v123 = vld [vmem:[#allocation5 + $0x190] sm:$0xff]
      %v124 = vld [vmem:[#allocation5 + $0x198] sm:$0xff]
      %v125 = vld [vmem:[#allocation5 + $0x1a0] sm:$0xff]
      %v126 = vld [vmem:[#allocation5 + $0x1a8] sm:$0xff]
      %v127 = vld [vmem:[#allocation5 + $0x1b0] sm:$0xff]
      %v128 = vld [vmem:[#allocation5 + $0x1b8] sm:$0xff]
      %v129 = vld [vmem:[#allocation5 + $0x1c0] sm:$0xff]
      %v130 = vld [vmem:[#allocation5 + $0x1c8] sm:$0xff]
      %v131 = vld [vmem:[#allocation5 + $0x1d0] sm:$0xff]
      %v132 = vld [vmem:[#allocation5 + $0x1d8] sm:$0xff]
      %v133 = vld [vmem:[#allocation5 + $0x1e0] sm:$0xff]
      %v134 = vld [vmem:[#allocation5 + $0x1e8] sm:$0xff]
      %v135 = vld [vmem:[#allocation5 + $0x1f0] sm:$0xff]
      %v136 = vld [vmem:[#allocation5 + $0x1f8] sm:$0xff]
      %v137 = vlaneseq
      %v138 = vshrl.u32 %v137, 7
      %v139 = vsub.s32 0, %v138
      %v140 = vrot.slane %v72, %v139
      %v141 = vlaneseq
      %v142 = vshrl.u32 %v141, 7
      %v143 = vsub.s32 1, %v142
      %v144 = vrot.slane %v72, %v143
      %vm145 = vcmp.eq.s32.totalorder %v73, %v140
      %vm146 = vcmp.eq.s32.totalorder %v74, %v144
      %vm147 = vcmp.eq.s32.totalorder %v75, %v140
      %vm148 = vcmp.eq.s32.totalorder %v76, %v144
      %vm149 = vcmp.eq.s32.totalorder %v77, %v140
      %vm150 = vcmp.eq.s32.totalorder %v78, %v144
      %vm151 = vcmp.eq.s32.totalorder %v79, %v140
      %vm152 = vcmp.eq.s32.totalorder %v80, %v144
      %vm153 = vcmp.eq.s32.totalorder %v81, %v140
      %vm154 = vcmp.eq.s32.totalorder %v82, %v144
      %vm155 = vcmp.eq.s32.totalorder %v83, %v140
      %vm156 = vcmp.eq.s32.totalorder %v84, %v144
      %vm157 = vcmp.eq.s32.totalorder %v85, %v140
      %vm158 = vcmp.eq.s32.totalorder %v86, %v144
      %vm159 = vcmp.eq.s32.totalorder %v87, %v140
      %vm160 = vcmp.eq.s32.totalorder %v88, %v144
      %vm161 = vcmp.eq.s32.totalorder %v89, %v140
      %vm162 = vcmp.eq.s32.totalorder %v90, %v144
      %vm163 = vcmp.eq.s32.totalorder %v91, %v140
      %vm164 = vcmp.eq.s32.totalorder %v92, %v144
      %vm165 = vcmp.eq.s32.totalorder %v93, %v140
      %vm166 = vcmp.eq.s32.totalorder %v94, %v144
      %vm167 = vcmp.eq.s32.totalorder %v95, %v140
      %vm168 = vcmp.eq.s32.totalorder %v96, %v144
      %vm169 = vcmp.eq.s32.totalorder %v97, %v140
      %vm170 = vcmp.eq.s32.totalorder %v98, %v144
      %vm171 = vcmp.eq.s32.totalorder %v99, %v140
      %vm172 = vcmp.eq.s32.totalorder %v100, %v144
      %vm173 = vcmp.eq.s32.totalorder %v101, %v140
      %vm174 = vcmp.eq.s32.totalorder %v102, %v144
      %vm175 = vcmp.eq.s32.totalorder %v103, %v140
      %vm176 = vcmp.eq.s32.totalorder %v104, %v144
      %vm177 = vcmp.eq.s32.totalorder %v105, %v140
      %vm178 = vcmp.eq.s32.totalorder %v106, %v144
      %vm179 = vcmp.eq.s32.totalorder %v107, %v140
      %vm180 = vcmp.eq.s32.totalorder %v108, %v144
      %vm181 = vcmp.eq.s32.totalorder %v109, %v140
      %vm182 = vcmp.eq.s32.totalorder %v110, %v144
      %vm183 = vcmp.eq.s32.totalorder %v111, %v140
      %vm184 = vcmp.eq.s32.totalorder %v112, %v144
      %vm185 = vcmp.eq.s32.totalorder %v113, %v140
      %vm186 = vcmp.eq.s32.totalorder %v114, %v144
      %vm187 = vcmp.eq.s32.totalorder %v115, %v140
      %vm188 = vcmp.eq.s32.totalorder %v116, %v144
      %vm189 = vcmp.eq.s32.totalorder %v117, %v140
      %vm190 = vcmp.eq.s32.totalorder %v118, %v144
      %vm191 = vcmp.eq.s32.totalorder %v119, %v140
      %vm192 = vcmp.eq.s32.totalorder %v120, %v144
      %vm193 = vcmp.eq.s32.totalorder %v121, %v140
      %vm194 = vcmp.eq.s32.totalorder %v122, %v144
      %vm195 = vcmp.eq.s32.totalorder %v123, %v140
      %vm196 = vcmp.eq.s32.totalorder %v124, %v144
      %vm197 = vcmp.eq.s32.totalorder %v125, %v140
      %vm198 = vcmp.eq.s32.totalorder %v126, %v144
      %vm199 = vcmp.eq.s32.totalorder %v127, %v140
      %vm200 = vcmp.eq.s32.totalorder %v128, %v144
      %vm201 = vcmp.eq.s32.totalorder %v129, %v140
      %vm202 = vcmp.eq.s32.totalorder %v130, %v144
      %vm203 = vcmp.eq.s32.totalorder %v131, %v140
      %vm204 = vcmp.eq.s32.totalorder %v132, %v144
      %vm205 = vcmp.eq.s32.totalorder %v133, %v140
      %vm206 = vcmp.eq.s32.totalorder %v134, %v144
      %vm207 = vcmp.eq.s32.totalorder %v135, %v140
      %vm208 = vcmp.eq.s32.totalorder %v136, %v144
      %v209 = vsel %vm145, 1, 0
      %v210 = vsel %vm146, 1, 0
      %v211 = vsel %vm147, 1, 0
      %v212 = vsel %vm148, 1, 0
      %v213 = vsel %vm149, 1, 0
      %v214 = vsel %vm150, 1, 0
      %v215 = vsel %vm151, 1, 0
      %v216 = vsel %vm152, 1, 0
      %v217 = vsel %vm153, 1, 0
      %v218 = vsel %vm154, 1, 0
      %v219 = vsel %vm155, 1, 0
      %v220 = vsel %vm156, 1, 0
      %v221 = vsel %vm157, 1, 0
      %v222 = vsel %vm158, 1, 0
      %v223 = vsel %vm159, 1, 0
      %v224 = vsel %vm160, 1, 0
      %v225 = vsel %vm161, 1, 0
      %v226 = vsel %vm162, 1, 0
      %v227 = vsel %vm163, 1, 0
      %v228 = vsel %vm164, 1, 0
      %v229 = vsel %vm165, 1, 0
      %v230 = vsel %vm166, 1, 0
      %v231 = vsel %vm167, 1, 0
      %v232 = vsel %vm168, 1, 0
      %v233 = vsel %vm169, 1, 0
      %v234 = vsel %vm170, 1, 0
      %v235 = vsel %vm171, 1, 0
      %v236 = vsel %vm172, 1, 0
      %v237 = vsel %vm173, 1, 0
      %v238 = vsel %vm174, 1, 0
      %v239 = vsel %vm175, 1, 0
      %v240 = vsel %vm176, 1, 0
      %v241 = vsel %vm177, 1, 0
      %v242 = vsel %vm178, 1, 0
      %v243 = vsel %vm179, 1, 0
      %v244 = vsel %vm180, 1, 0
      %v245 = vsel %vm181, 1, 0
      %v246 = vsel %vm182, 1, 0
      %v247 = vsel %vm183, 1, 0
      %v248 = vsel %vm184, 1, 0
      %v249 = vsel %vm185, 1, 0
      %v250 = vsel %vm186, 1, 0
      %v251 = vsel %vm187, 1, 0
      %v252 = vsel %vm188, 1, 0
      %v253 = vsel %vm189, 1, 0
      %v254 = vsel %vm190, 1, 0
      %v255 = vsel %vm191, 1, 0
      %v256 = vsel %vm192, 1, 0
      %v257 = vsel %vm193, 1, 0
      %v258 = vsel %vm194, 1, 0
      %v259 = vsel %vm195, 1, 0
      %v260 = vsel %vm196, 1, 0
      %v261 = vsel %vm197, 1, 0
      %v262 = vsel %vm198, 1, 0
      %v263 = vsel %vm199, 1, 0
      %v264 = vsel %vm200, 1, 0
      %v265 = vsel %vm201, 1, 0
      %v266 = vsel %vm202, 1, 0
      %v267 = vsel %vm203, 1, 0
      %v268 = vsel %vm204, 1, 0
      %v269 = vsel %vm205, 1, 0
      %v270 = vsel %vm206, 1, 0
      %v271 = vsel %vm207, 1, 0
      %v272 = vsel %vm208, 1, 0
      %v273 = vcvt.s32.f32 %v209
      %v274 = vcvt.s32.f32 %v210
      %v275 = vcvt.s32.f32 %v211
      %v276 = vcvt.s32.f32 %v212
      %v277 = vcvt.s32.f32 %v213
      %v278 = vcvt.s32.f32 %v214
      %v279 = vcvt.s32.f32 %v215
      %v280 = vcvt.s32.f32 %v216
      %v281 = vcvt.s32.f32 %v217
      %v282 = vcvt.s32.f32 %v218
      %v283 = vcvt.s32.f32 %v219
      %v284 = vcvt.s32.f32 %v220
      %v285 = vcvt.s32.f32 %v221
      %v286 = vcvt.s32.f32 %v222
      %v287 = vcvt.s32.f32 %v223
      %v288 = vcvt.s32.f32 %v224
      %v289 = vcvt.s32.f32 %v225
      %v290 = vcvt.s32.f32 %v226
      %v291 = vcvt.s32.f32 %v227
      %v292 = vcvt.s32.f32 %v228
      %v293 = vcvt.s32.f32 %v229
      %v294 = vcvt.s32.f32 %v230
      %v295 = vcvt.s32.f32 %v231
      %v296 = vcvt.s32.f32 %v232
      %v297 = vcvt.s32.f32 %v233
      %v298 = vcvt.s32.f32 %v234
      %v299 = vcvt.s32.f32 %v235
      %v300 = vcvt.s32.f32 %v236
      %v301 = vcvt.s32.f32 %v237
      %v302 = vcvt.s32.f32 %v238
      %v303 = vcvt.s32.f32 %v239
      %v304 = vcvt.s32.f32 %v240
      %v305 = vcvt.s32.f32 %v241
      %v306 = vcvt.s32.f32 %v242
      %v307 = vcvt.s32.f32 %v243
      %v308 = vcvt.s32.f32 %v244
      %v309 = vcvt.s32.f32 %v245
      %v310 = vcvt.s32.f32 %v246
      %v311 = vcvt.s32.f32 %v247
      %v312 = vcvt.s32.f32 %v248
      %v313 = vcvt.s32.f32 %v249
      %v314 = vcvt.s32.f32 %v250
      %v315 = vcvt.s32.f32 %v251
      %v316 = vcvt.s32.f32 %v252
      %v317 = vcvt.s32.f32 %v253
      %v318 = vcvt.s32.f32 %v254
      %v319 = vcvt.s32.f32 %v255
      %v320 = vcvt.s32.f32 %v256
      %v321 = vcvt.s32.f32 %v257
      %v322 = vcvt.s32.f32 %v258
      %v323 = vcvt.s32.f32 %v259
      %v324 = vcvt.s32.f32 %v260
      %v325 = vcvt.s32.f32 %v261
      %v326 = vcvt.s32.f32 %v262
      %v327 = vcvt.s32.f32 %v263
      %v328 = vcvt.s32.f32 %v264
      %v329 = vcvt.s32.f32 %v265
      %v330 = vcvt.s32.f32 %v266
      %v331 = vcvt.s32.f32 %v267
      %v332 = vcvt.s32.f32 %v268
      %v333 = vcvt.s32.f32 %v269
      %v334 = vcvt.s32.f32 %v270
      %v335 = vcvt.s32.f32 %v271
      %v336 = vcvt.s32.f32 %v272
      %s337 = smul.u32 0, 4
      %s338 = smul.addr %s337, 8
      %s339 = scalar_lea.vmem [#allocation8], %s338
      %v340 = vld [vmem:[%s339] sm:$0xff]
      %v341 = vld [vmem:[%s339 + $0x8] sm:$0xff]
      %v342 = vld [vmem:[%s339 + $0x10] sm:$0xff]
      %v343 = vld [vmem:[%s339 + $0x18] sm:$0xff]
      %v344 = vld [vmem:[#allocation2] sm:$0xff]
      %v345 = vld [vmem:[#allocation2 + $0x8] sm:$0xff]
      %v346 = vld [vmem:[#allocation2 + $0x10] sm:$0xff]
      %v347 = vld [vmem:[#allocation2 + $0x18] sm:$0xff]
      %v348 = vand.u32 %v274, 4294901760
      %349 = vmatprep.subr.mxu0 %v348
      %v350 = vand.u32 %v273, 4294901760
      %351 = vmatpush1.msra.mxu0 %v350
      %v352 = vand.u32 %v276, 4294901760
      %353 = vmatprep.subr.mxu0 %v352
      %v354 = vand.u32 %v275, 4294901760
      %355 = vmatpush1.msra.mxu0 %v354
      %v356 = vand.u32 %v278, 4294901760
      %357 = vmatprep.subr.mxu0 %v356
      %v358 = vand.u32 %v277, 4294901760
      %359 = vmatpush1.msra.mxu0 %v358
      %v360 = vand.u32 %v280, 4294901760
      %361 = vmatprep.subr.mxu0 %v360
      %v362 = vand.u32 %v279, 4294901760
      %363 = vmatpush1.msra.mxu0 %v362
      %v364 = vand.u32 %v282, 4294901760
      %365 = vmatprep.subr.mxu0 %v364
      %v366 = vand.u32 %v281, 4294901760
      %367 = vmatpush1.msra.mxu0 %v366
      %v368 = vand.u32 %v284, 4294901760
      %369 = vmatprep.subr.mxu0 %v368
      %v370 = vand.u32 %v283, 4294901760
      %371 = vmatpush1.msra.mxu0 %v370
      %v372 = vand.u32 %v286, 4294901760
      %373 = vmatprep.subr.mxu0 %v372
      %v374 = vand.u32 %v285, 4294901760
      %375 = vmatpush1.msra.mxu0 %v374
      %v376 = vand.u32 %v288, 4294901760
      %377 = vmatprep.subr.mxu0 %v376
      %v378 = vand.u32 %v287, 4294901760
      %379 = vmatpush1.msra.mxu0 %v378
      %v380 = vand.u32 %v290, 4294901760
      %381 = vmatprep.subr.mxu0 %v380
      %v382 = vand.u32 %v289, 4294901760
      %383 = vmatpush1.msra.mxu0 %v382
      %v384 = vand.u32 %v292, 4294901760
      %385 = vmatprep.subr.mxu0 %v384
      %v386 = vand.u32 %v291, 4294901760
      %387 = vmatpush1.msra.mxu0 %v386
      %v388 = vand.u32 %v294, 4294901760
      %389 = vmatprep.subr.mxu0 %v388
      %v390 = vand.u32 %v293, 4294901760
      %391 = vmatpush1.msra.mxu0 %v390
      %v392 = vand.u32 %v296, 4294901760
      %393 = vmatprep.subr.mxu0 %v392
      %v394 = vand.u32 %v295, 4294901760
      %395 = vmatpush1.msra.mxu0 %v394
      %v396 = vand.u32 %v298, 4294901760
      %397 = vmatprep.subr.mxu0 %v396
      %v398 = vand.u32 %v297, 4294901760
      %399 = vmatpush1.msra.mxu0 %v398
      %v400 = vand.u32 %v300, 4294901760
      %401 = vmatprep.subr.mxu0 %v400
      %v402 = vand.u32 %v299, 4294901760
      %403 = vmatpush1.msra.mxu0 %v402
      %v404 = vand.u32 %v302, 4294901760
      %405 = vmatprep.subr.mxu0 %v404
      %v406 = vand.u32 %v301, 4294901760
      %407 = vmatpush1.msra.mxu0 %v406
      %v408 = vand.u32 %v304, 4294901760
      %409 = vmatprep.subr.mxu0 %v408
      %v410 = vand.u32 %v303, 4294901760
      %411 = vmatpush1.msra.mxu0 %v410
      %v412 = vand.u32 %v306, 4294901760
      %413 = vmatprep.subr.mxu0 %v412
      %v414 = vand.u32 %v305, 4294901760
      %415 = vmatpush1.msra.mxu0 %v414
      %v416 = vand.u32 %v308, 4294901760
      %417 = vmatprep.subr.mxu0 %v416
      %v418 = vand.u32 %v307, 4294901760
      %419 = vmatpush1.msra.mxu0 %v418
      %v420 = vand.u32 %v310, 4294901760
      %421 = vmatprep.subr.mxu0 %v420
      %v422 = vand.u32 %v309, 4294901760
      %423 = vmatpush1.msra.mxu0 %v422
      %v424 = vand.u32 %v312, 4294901760
      %425 = vmatprep.subr.mxu0 %v424
      %v426 = vand.u32 %v311, 4294901760
      %427 = vmatpush1.msra.mxu0 %v426
      %v428 = vand.u32 %v314, 4294901760
      %429 = vmatprep.subr.mxu0 %v428
      %v430 = vand.u32 %v313, 4294901760
      %431 = vmatpush1.msra.mxu0 %v430
      %v432 = vand.u32 %v316, 4294901760
      %433 = vmatprep.subr.mxu0 %v432
      %v434 = vand.u32 %v315, 4294901760
      %435 = vmatpush1.msra.mxu0 %v434
      %v436 = vand.u32 %v318, 4294901760
      %437 = vmatprep.subr.mxu0 %v436
      %v438 = vand.u32 %v317, 4294901760
      %439 = vmatpush1.msra.mxu0 %v438
      %v440 = vand.u32 %v320, 4294901760
      %441 = vmatprep.subr.mxu0 %v440
      %v442 = vand.u32 %v319, 4294901760
      %443 = vmatpush1.msra.mxu0 %v442
      %v444 = vand.u32 %v322, 4294901760
      %445 = vmatprep.subr.mxu0 %v444
      %v446 = vand.u32 %v321, 4294901760
      %447 = vmatpush1.msra.mxu0 %v446
      %v448 = vand.u32 %v324, 4294901760
      %449 = vmatprep.subr.mxu0 %v448
      %v450 = vand.u32 %v323, 4294901760
      %451 = vmatpush1.msra.mxu0 %v450
      %v452 = vand.u32 %v326, 4294901760
      %453 = vmatprep.subr.mxu0 %v452
      %v454 = vand.u32 %v325, 4294901760
      %455 = vmatpush1.msra.mxu0 %v454
      %v456 = vand.u32 %v328, 4294901760
      %457 = vmatprep.subr.mxu0 %v456
      %v458 = vand.u32 %v327, 4294901760
      %459 = vmatpush1.msra.mxu0 %v458
      %v460 = vand.u32 %v330, 4294901760
      %461 = vmatprep.subr.mxu0 %v460
      %v462 = vand.u32 %v329, 4294901760
      %463 = vmatpush1.msra.mxu0 %v462
      %v464 = vand.u32 %v332, 4294901760
      %465 = vmatprep.subr.mxu0 %v464
      %v466 = vand.u32 %v331, 4294901760
      %467 = vmatpush1.msra.mxu0 %v466
      %v468 = vand.u32 %v334, 4294901760
      %469 = vmatprep.subr.mxu0 %v468
      %v470 = vand.u32 %v333, 4294901760
      %471 = vmatpush1.msra.mxu0 %v470
      %v472 = vand.u32 %v336, 4294901760
      %473 = vmatprep.subr.mxu0 %v472
      %v474 = vand.u32 %v335, 4294901760
      %475 = vmatpush1.msra.mxu0 %v474
      %v476 = vand.u32 %v341, 4294901760
      %v477 = vsub.f32 %v341, %v476
      %v478 = vand.u32 %v477, 4294901760
      %v479 = vsub.f32 %v477, %v478
      %v480 = vand.u32 %v479, 4294901760
      %481 = vmatprep.mubr.f32.mxu0 %v480
      %v482 = vand.u32 %v340, 4294901760
      %v483 = vsub.f32 %v340, %v482
      %v484 = vand.u32 %v483, 4294901760
      %v485 = vsub.f32 %v483, %v484
      %v486 = vand.u32 %v485, 4294901760
      %487 = vmatmul.mubr.f32.gmra.mrb[0].mxu0 %v486
      %v488 = vpop.f32.mrb[0].mxu0
      %v489 = vadd.f32 0.0, %v488
      %v490 = vpop.f32.mrb[0].mxu0
      %v491 = vadd.f32 0.0, %v490
      %v492 = vand.u32 %v343, 4294901760
      %v493 = vsub.f32 %v343, %v492
      %v494 = vand.u32 %v493, 4294901760
      %v495 = vsub.f32 %v493, %v494
      %v496 = vand.u32 %v495, 4294901760
      %497 = vmatprep.mubr.f32.mxu0 %v496
      %v498 = vand.u32 %v342, 4294901760
      %v499 = vsub.f32 %v342, %v498
      %v500 = vand.u32 %v499, 4294901760
      %v501 = vsub.f32 %v499, %v500
      %v502 = vand.u32 %v501, 4294901760
      %503 = vmatmul.mubr.f32.gmra.mrb[0].mxu0 %v502
      %v504 = vpop.f32.mrb[0].mxu0
      %v505 = vadd.f32 0.0, %v504
      %v506 = vpop.f32.mrb[0].mxu0
      %v507 = vadd.f32 0.0, %v506
      %508 = vdwg.mxu0
      %v509 = vand.u32 %v274, 4294901760
      %v510 = vsub.f32 %v274, %v509
      %v511 = vand.u32 %v510, 4294901760
      %v512 = vsub.f32 %v510, %v511
      %v513 = vand.u32 %v512, 4294901760
      %514 = vmatprep.subr.mxu0 %v513
      %v515 = vand.u32 %v273, 4294901760
      %v516 = vsub.f32 %v273, %v515
      %v517 = vand.u32 %v516, 4294901760
      %v518 = vsub.f32 %v516, %v517
      %v519 = vand.u32 %v518, 4294901760
      %520 = vmatpush1.msra.mxu0 %v519
      %v521 = vand.u32 %v276, 4294901760
      %v522 = vsub.f32 %v276, %v521
      %v523 = vand.u32 %v522, 4294901760
      %v524 = vsub.f32 %v522, %v523
      %v525 = vand.u32 %v524, 4294901760
      %526 = vmatprep.subr.mxu0 %v525
      %v527 = vand.u32 %v275, 4294901760
      %v528 = vsub.f32 %v275, %v527
      %v529 = vand.u32 %v528, 4294901760
      %v530 = vsub.f32 %v528, %v529
      %v531 = vand.u32 %v530, 4294901760
      %532 = vmatpush1.msra.mxu0 %v531
      %v533 = vand.u32 %v278, 4294901760
      %v534 = vsub.f32 %v278, %v533
      %v535 = vand.u32 %v534, 4294901760
      %v536 = vsub.f32 %v534, %v535
      %v537 = vand.u32 %v536, 4294901760
      %538 = vmatprep.subr.mxu0 %v537
      %v539 = vand.u32 %v277, 4294901760
      %v540 = vsub.f32 %v277, %v539
      %v541 = vand.u32 %v540, 4294901760
      %v542 = vsub.f32 %v540, %v541
      %v543 = vand.u32 %v542, 4294901760
      %544 = vmatpush1.msra.mxu0 %v543
      %v545 = vand.u32 %v280, 4294901760
      %v546 = vsub.f32 %v280, %v545
      %v547 = vand.u32 %v546, 4294901760
      %v548 = vsub.f32 %v546, %v547
      %v549 = vand.u32 %v548, 4294901760
      %550 = vmatprep.subr.mxu0 %v549
      %v551 = vand.u32 %v279, 4294901760
      %v552 = vsub.f32 %v279, %v551
      %v553 = vand.u32 %v552, 4294901760
      %v554 = vsub.f32 %v552, %v553
      %v555 = vand.u32 %v554, 4294901760
      %556 = vmatpush1.msra.mxu0 %v555
      %v557 = vand.u32 %v282, 4294901760
      %v558 = vsub.f32 %v282, %v557
      %v559 = vand.u32 %v558, 4294901760
      %v560 = vsub.f32 %v558, %v559
      %v561 = vand.u32 %v560, 4294901760
      %562 = vmatprep.subr.mxu0 %v561
      %v563 = vand.u32 %v281, 4294901760
      %v564 = vsub.f32 %v281, %v563
      %v565 = vand.u32 %v564, 4294901760
      %v566 = vsub.f32 %v564, %v565
      %v567 = vand.u32 %v566, 4294901760
      %568 = vmatpush1.msra.mxu0 %v567
      %v569 = vand.u32 %v284, 4294901760
      %v570 = vsub.f32 %v284, %v569
      %v571 = vand.u32 %v570, 4294901760
      %v572 = vsub.f32 %v570, %v571
      %v573 = vand.u32 %v572, 4294901760
      %574 = vmatprep.subr.mxu0 %v573
      %v575 = vand.u32 %v283, 4294901760
      %v576 = vsub.f32 %v283, %v575
      %v577 = vand.u32 %v576, 4294901760
      %v578 = vsub.f32 %v576, %v577
      %v579 = vand.u32 %v578, 4294901760
      %580 = vmatpush1.msra.mxu0 %v579
      %v581 = vand.u32 %v286, 4294901760
      %v582 = vsub.f32 %v286, %v581
      %v583 = vand.u32 %v582, 4294901760
      %v584 = vsub.f32 %v582, %v583
      %v585 = vand.u32 %v584, 4294901760
      %586 = vmatprep.subr.mxu0 %v585
      %v587 = vand.u32 %v285, 4294901760
      %v588 = vsub.f32 %v285, %v587
      %v589 = vand.u32 %v588, 4294901760
      %v590 = vsub.f32 %v588, %v589
      %v591 = vand.u32 %v590, 4294901760
      %592 = vmatpush1.msra.mxu0 %v591
      %v593 = vand.u32 %v288, 4294901760
      %v594 = vsub.f32 %v288, %v593
      %v595 = vand.u32 %v594, 4294901760
      %v596 = vsub.f32 %v594, %v595
      %v597 = vand.u32 %v596, 4294901760
      %598 = vmatprep.subr.mxu0 %v597
      %v599 = vand.u32 %v287, 4294901760
      %v600 = vsub.f32 %v287, %v599
      %v601 = vand.u32 %v600, 4294901760
      %v602 = vsub.f32 %v600, %v601
      %v603 = vand.u32 %v602, 4294901760
      %604 = vmatpush1.msra.mxu0 %v603
      %v605 = vand.u32 %v290, 4294901760
      %v606 = vsub.f32 %v290, %v605
      %v607 = vand.u32 %v606, 4294901760
      %v608 = vsub.f32 %v606, %v607
      %v609 = vand.u32 %v608, 4294901760
      %610 = vmatprep.subr.mxu0 %v609
      %v611 = vand.u32 %v289, 4294901760
      %v612 = vsub.f32 %v289, %v611
      %v613 = vand.u32 %v612, 4294901760
      %v614 = vsub.f32 %v612, %v613
      %v615 = vand.u32 %v614, 4294901760
      %616 = vmatpush1.msra.mxu0 %v615
      %v617 = vand.u32 %v292, 4294901760
      %v618 = vsub.f32 %v292, %v617
      %v619 = vand.u32 %v618, 4294901760
      %v620 = vsub.f32 %v618, %v619
      %v621 = vand.u32 %v620, 4294901760
      %622 = vmatprep.subr.mxu0 %v621
      %v623 = vand.u32 %v291, 4294901760
      %v624 = vsub.f32 %v291, %v623
      %v625 = vand.u32 %v624, 4294901760
      %v626 = vsub.f32 %v624, %v625
      %v627 = vand.u32 %v626, 4294901760
      %628 = vmatpush1.msra.mxu0 %v627
      %v629 = vand.u32 %v294, 4294901760
      %v630 = vsub.f32 %v294, %v629
      %v631 = vand.u32 %v630, 4294901760
      %v632 = vsub.f32 %v630, %v631
      %v633 = vand.u32 %v632, 4294901760
      %634 = vmatprep.subr.mxu0 %v633
      %v635 = vand.u32 %v293, 4294901760
      %v636 = vsub.f32 %v293, %v635
      %v637 = vand.u32 %v636, 4294901760
      %v638 = vsub.f32 %v636, %v637
      %v639 = vand.u32 %v638, 4294901760
      %640 = vmatpush1.msra.mxu0 %v639
      %v641 = vand.u32 %v296, 4294901760
      %v642 = vsub.f32 %v296, %v641
      %v643 = vand.u32 %v642, 4294901760
      %v644 = vsub.f32 %v642, %v643
      %v645 = vand.u32 %v644, 4294901760
      %646 = vmatprep.subr.mxu0 %v645
      %v647 = vand.u32 %v295, 4294901760
      %v648 = vsub.f32 %v295, %v647
      %v649 = vand.u32 %v648, 4294901760
      %v650 = vsub.f32 %v648, %v649
      %v651 = vand.u32 %v650, 4294901760
      %652 = vmatpush1.msra.mxu0 %v651
      %v653 = vand.u32 %v298, 4294901760
      %v654 = vsub.f32 %v298, %v653
      %v655 = vand.u32 %v654, 4294901760
      %v656 = vsub.f32 %v654, %v655
      %v657 = vand.u32 %v656, 4294901760
      %658 = vmatprep.subr.mxu0 %v657
      %v659 = vand.u32 %v297, 4294901760
      %v660 = vsub.f32 %v297, %v659
      %v661 = vand.u32 %v660, 4294901760
      %v662 = vsub.f32 %v660, %v661
      %v663 = vand.u32 %v662, 4294901760
      %664 = vmatpush1.msra.mxu0 %v663
      %v665 = vand.u32 %v300, 4294901760
      %v666 = vsub.f32 %v300, %v665
      %v667 = vand.u32 %v666, 4294901760
      %v668 = vsub.f32 %v666, %v667
      %v669 = vand.u32 %v668, 4294901760
      %670 = vmatprep.subr.mxu0 %v669
      %v671 = vand.u32 %v299, 4294901760
      %v672 = vsub.f32 %v299, %v671
      %v673 = vand.u32 %v672, 4294901760
      %v674 = vsub.f32 %v672, %v673
      %v675 = vand.u32 %v674, 4294901760
      %676 = vmatpush1.msra.mxu0 %v675
      %v677 = vand.u32 %v302, 4294901760
      %v678 = vsub.f32 %v302, %v677
      %v679 = vand.u32 %v678, 4294901760
      %v680 = vsub.f32 %v678, %v679
      %v681 = vand.u32 %v680, 4294901760
      %682 = vmatprep.subr.mxu0 %v681
      %v683 = vand.u32 %v301, 4294901760
      %v684 = vsub.f32 %v301, %v683
      %v685 = vand.u32 %v684, 4294901760
      %v686 = vsub.f32 %v684, %v685
      %v687 = vand.u32 %v686, 4294901760
      %688 = vmatpush1.msra.mxu0 %v687
      %v689 = vand.u32 %v304, 4294901760
      %v690 = vsub.f32 %v304, %v689
      %v691 = vand.u32 %v690, 4294901760
      %v692 = vsub.f32 %v690, %v691
      %v693 = vand.u32 %v692, 4294901760
      %694 = vmatprep.subr.mxu0 %v693
      %v695 = vand.u32 %v303, 4294901760
      %v696 = vsub.f32 %v303, %v695
      %v697 = vand.u32 %v696, 4294901760
      %v698 = vsub.f32 %v696, %v697
      %v699 = vand.u32 %v698, 4294901760
      %700 = vmatpush1.msra.mxu0 %v699
      %v701 = vand.u32 %v306, 4294901760
      %v702 = vsub.f32 %v306, %v701
      %v703 = vand.u32 %v702, 4294901760
      %v704 = vsub.f32 %v702, %v703
      %v705 = vand.u32 %v704, 4294901760
      %706 = vmatprep.subr.mxu0 %v705
      %v707 = vand.u32 %v305, 4294901760
      %v708 = vsub.f32 %v305, %v707
      %v709 = vand.u32 %v708, 4294901760
      %v710 = vsub.f32 %v708, %v709
      %v711 = vand.u32 %v710, 4294901760
      %712 = vmatpush1.msra.mxu0 %v711
      %v713 = vand.u32 %v308, 4294901760
      %v714 = vsub.f32 %v308, %v713
      %v715 = vand.u32 %v714, 4294901760
      %v716 = vsub.f32 %v714, %v715
      %v717 = vand.u32 %v716, 4294901760
      %718 = vmatprep.subr.mxu0 %v717
      %v719 = vand.u32 %v307, 4294901760
      %v720 = vsub.f32 %v307, %v719
      %v721 = vand.u32 %v720, 4294901760
      %v722 = vsub.f32 %v720, %v721
      %v723 = vand.u32 %v722, 4294901760
      %724 = vmatpush1.msra.mxu0 %v723
      %v725 = vand.u32 %v310, 4294901760
      %v726 = vsub.f32 %v310, %v725
      %v727 = vand.u32 %v726, 4294901760
      %v728 = vsub.f32 %v726, %v727
      %v729 = vand.u32 %v728, 4294901760
      %730 = vmatprep.subr.mxu0 %v729
      %v731 = vand.u32 %v309, 4294901760
      %v732 = vsub.f32 %v309, %v731
      %v733 = vand.u32 %v732, 4294901760
      %v734 = vsub.f32 %v732, %v733
      %v735 = vand.u32 %v734, 4294901760
      %736 = vmatpush1.msra.mxu0 %v735
      %v737 = vand.u32 %v312, 4294901760
      %v738 = vsub.f32 %v312, %v737
      %v739 = vand.u32 %v738, 4294901760
      %v740 = vsub.f32 %v738, %v739
      %v741 = vand.u32 %v740, 4294901760
      %742 = vmatprep.subr.mxu0 %v741
      %v743 = vand.u32 %v311, 4294901760
      %v744 = vsub.f32 %v311, %v743
      %v745 = vand.u32 %v744, 4294901760
      %v746 = vsub.f32 %v744, %v745
      %v747 = vand.u32 %v746, 4294901760
      %748 = vmatpush1.msra.mxu0 %v747
      %v749 = vand.u32 %v314, 4294901760
      %v750 = vsub.f32 %v314, %v749
      %v751 = vand.u32 %v750, 4294901760
      %v752 = vsub.f32 %v750, %v751
      %v753 = vand.u32 %v752, 4294901760
      %754 = vmatprep.subr.mxu0 %v753
      %v755 = vand.u32 %v313, 4294901760
      %v756 = vsub.f32 %v313, %v755
      %v757 = vand.u32 %v756, 4294901760
      %v758 = vsub.f32 %v756, %v757
      %v759 = vand.u32 %v758, 4294901760
      %760 = vmatpush1.msra.mxu0 %v759
      %v761 = vand.u32 %v316, 4294901760
      %v762 = vsub.f32 %v316, %v761
      %v763 = vand.u32 %v762, 4294901760
      %v764 = vsub.f32 %v762, %v763
      %v765 = vand.u32 %v764, 4294901760
      %766 = vmatprep.subr.mxu0 %v765
      %v767 = vand.u32 %v315, 4294901760
      %v768 = vsub.f32 %v315, %v767
      %v769 = vand.u32 %v768, 4294901760
      %v770 = vsub.f32 %v768, %v769
      %v771 = vand.u32 %v770, 4294901760
      %772 = vmatpush1.msra.mxu0 %v771
      %v773 = vand.u32 %v318, 4294901760
      %v774 = vsub.f32 %v318, %v773
      %v775 = vand.u32 %v774, 4294901760
      %v776 = vsub.f32 %v774, %v775
      %v777 = vand.u32 %v776, 4294901760
      %778 = vmatprep.subr.mxu0 %v777
      %v779 = vand.u32 %v317, 4294901760
      %v780 = vsub.f32 %v317, %v779
      %v781 = vand.u32 %v780, 4294901760
      %v782 = vsub.f32 %v780, %v781
      %v783 = vand.u32 %v782, 4294901760
      %784 = vmatpush1.msra.mxu0 %v783
      %v785 = vand.u32 %v320, 4294901760
      %v786 = vsub.f32 %v320, %v785
      %v787 = vand.u32 %v786, 4294901760
      %v788 = vsub.f32 %v786, %v787
      %v789 = vand.u32 %v788, 4294901760
      %790 = vmatprep.subr.mxu0 %v789
      %v791 = vand.u32 %v319, 4294901760
      %v792 = vsub.f32 %v319, %v791
      %v793 = vand.u32 %v792, 4294901760
      %v794 = vsub.f32 %v792, %v793
      %v795 = vand.u32 %v794, 4294901760
      %796 = vmatpush1.msra.mxu0 %v795
      %v797 = vand.u32 %v322, 4294901760
      %v798 = vsub.f32 %v322, %v797
      %v799 = vand.u32 %v798, 4294901760
      %v800 = vsub.f32 %v798, %v799
      %v801 = vand.u32 %v800, 4294901760
      %802 = vmatprep.subr.mxu0 %v801
      %v803 = vand.u32 %v321, 4294901760
      %v804 = vsub.f32 %v321, %v803
      %v805 = vand.u32 %v804, 4294901760
      %v806 = vsub.f32 %v804, %v805
      %v807 = vand.u32 %v806, 4294901760
      %808 = vmatpush1.msra.mxu0 %v807
      %v809 = vand.u32 %v324, 4294901760
      %v810 = vsub.f32 %v324, %v809
      %v811 = vand.u32 %v810, 4294901760
      %v812 = vsub.f32 %v810, %v811
      %v813 = vand.u32 %v812, 4294901760
      %814 = vmatprep.subr.mxu0 %v813
      %v815 = vand.u32 %v323, 4294901760
      %v816 = vsub.f32 %v323, %v815
      %v817 = vand.u32 %v816, 4294901760
      %v818 = vsub.f32 %v816, %v817
      %v819 = vand.u32 %v818, 4294901760
      %820 = vmatpush1.msra.mxu0 %v819
      %v821 = vand.u32 %v326, 4294901760
      %v822 = vsub.f32 %v326, %v821
      %v823 = vand.u32 %v822, 4294901760
      %v824 = vsub.f32 %v822, %v823
      %v825 = vand.u32 %v824, 4294901760
      %826 = vmatprep.subr.mxu0 %v825
      %v827 = vand.u32 %v325, 4294901760
      %v828 = vsub.f32 %v325, %v827
      %v829 = vand.u32 %v828, 4294901760
      %v830 = vsub.f32 %v828, %v829
      %v831 = vand.u32 %v830, 4294901760
      %832 = vmatpush1.msra.mxu0 %v831
      %v833 = vand.u32 %v328, 4294901760
      %v834 = vsub.f32 %v328, %v833
      %v835 = vand.u32 %v834, 4294901760
      %v836 = vsub.f32 %v834, %v835
      %v837 = vand.u32 %v836, 4294901760
      %838 = vmatprep.subr.mxu0 %v837
      %v839 = vand.u32 %v327, 4294901760
      %v840 = vsub.f32 %v327, %v839
      %v841 = vand.u32 %v840, 4294901760
      %v842 = vsub.f32 %v840, %v841
      %v843 = vand.u32 %v842, 4294901760
      %844 = vmatpush1.msra.mxu0 %v843
      %v845 = vand.u32 %v330, 4294901760
      %v846 = vsub.f32 %v330, %v845
      %v847 = vand.u32 %v846, 4294901760
      %v848 = vsub.f32 %v846, %v847
      %v849 = vand.u32 %v848, 4294901760
      %850 = vmatprep.subr.mxu0 %v849
      %v851 = vand.u32 %v329, 4294901760
      %v852 = vsub.f32 %v329, %v851
      %v853 = vand.u32 %v852, 4294901760
      %v854 = vsub.f32 %v852, %v853
      %v855 = vand.u32 %v854, 4294901760
      %856 = vmatpush1.msra.mxu0 %v855
      %v857 = vand.u32 %v332, 4294901760
      %v858 = vsub.f32 %v332, %v857
      %v859 = vand.u32 %v858, 4294901760
      %v860 = vsub.f32 %v858, %v859
      %v861 = vand.u32 %v860, 4294901760
      %862 = vmatprep.subr.mxu0 %v861
      %v863 = vand.u32 %v331, 4294901760
      %v864 = vsub.f32 %v331, %v863
      %v865 = vand.u32 %v864, 4294901760
      %v866 = vsub.f32 %v864, %v865
      %v867 = vand.u32 %v866, 4294901760
      %868 = vmatpush1.msra.mxu0 %v867
      %v869 = vand.u32 %v334, 4294901760
      %v870 = vsub.f32 %v334, %v869
      %v871 = vand.u32 %v870, 4294901760
      %v872 = vsub.f32 %v870, %v871
      %v873 = vand.u32 %v872, 4294901760
      %874 = vmatprep.subr.mxu0 %v873
      %v875 = vand.u32 %v333, 4294901760
      %v876 = vsub.f32 %v333, %v875
      %v877 = vand.u32 %v876, 4294901760
      %v878 = vsub.f32 %v876, %v877
      %v879 = vand.u32 %v878, 4294901760
      %880 = vmatpush1.msra.mxu0 %v879
      %v881 = vand.u32 %v336, 4294901760
      %v882 = vsub.f32 %v336, %v881
      %v883 = vand.u32 %v882, 4294901760
      %v884 = vsub.f32 %v882, %v883
      %v885 = vand.u32 %v884, 4294901760
      %886 = vmatprep.subr.mxu0 %v885
      %v887 = vand.u32 %v335, 4294901760
      %v888 = vsub.f32 %v335, %v887
      %v889 = vand.u32 %v888, 4294901760
      %v890 = vsub.f32 %v888, %v889
      %v891 = vand.u32 %v890, 4294901760
      %892 = vmatpush1.msra.mxu0 %v891
      %v893 = vand.u32 %v341, 4294901760
      %894 = vmatprep.mubr.f32.mxu0 %v893
      %v895 = vand.u32 %v340, 4294901760
      %896 = vmatmul.mubr.f32.gmra.mrb[0].mxu0 %v895
      %v897 = vpop.f32.mrb[0].mxu0
      %v898 = vadd.f32 %v489, %v897
      %v899 = vpop.f32.mrb[0].mxu0
      %v900 = vadd.f32 %v491, %v899
      %v901 = vand.u32 %v343, 4294901760
      %902 = vmatprep.mubr.f32.mxu0 %v901
      %v903 = vand.u32 %v342, 4294901760
      %904 = vmatmul.mubr.f32.gmra.mrb[0].mxu0 %v903
      %v905 = vpop.f32.mrb[0].mxu0
      %v906 = vadd.f32 %v505, %v905
      %v907 = vpop.f32.mrb[0].mxu0
      %v908 = vadd.f32 %v507, %v907
      %909 = vdwg.mxu0
      %v910 = vand.u32 %v274, 4294901760
      %v911 = vsub.f32 %v274, %v910
      %912 = vmatprep.subr.mxu0 %v911
      %v913 = vand.u32 %v273, 4294901760
      %v914 = vsub.f32 %v273, %v913
      %915 = vmatpush1.msra.mxu0 %v914
      %v916 = vand.u32 %v276, 4294901760
      %v917 = vsub.f32 %v276, %v916
      %918 = vmatprep.subr.mxu0 %v917
      %v919 = vand.u32 %v275, 4294901760
      %v920 = vsub.f32 %v275, %v919
      %921 = vmatpush1.msra.mxu0 %v920
      %v922 = vand.u32 %v278, 4294901760
      %v923 = vsub.f32 %v278, %v922
      %924 = vmatprep.subr.mxu0 %v923
      %v925 = vand.u32 %v277, 4294901760
      %v926 = vsub.f32 %v277, %v925
      %927 = vmatpush1.msra.mxu0 %v926
      %v928 = vand.u32 %v280, 4294901760
      %v929 = vsub.f32 %v280, %v928
      %930 = vmatprep.subr.mxu0 %v929
      %v931 = vand.u32 %v279, 4294901760
      %v932 = vsub.f32 %v279, %v931
      %933 = vmatpush1.msra.mxu0 %v932
      %v934 = vand.u32 %v282, 4294901760
      %v935 = vsub.f32 %v282, %v934
      %936 = vmatprep.subr.mxu0 %v935
      %v937 = vand.u32 %v281, 4294901760
      %v938 = vsub.f32 %v281, %v937
      %939 = vmatpush1.msra.mxu0 %v938
      %v940 = vand.u32 %v284, 4294901760
      %v941 = vsub.f32 %v284, %v940
      %942 = vmatprep.subr.mxu0 %v941
      %v943 = vand.u32 %v283, 4294901760
      %v944 = vsub.f32 %v283, %v943
      %945 = vmatpush1.msra.mxu0 %v944
      %v946 = vand.u32 %v286, 4294901760
      %v947 = vsub.f32 %v286, %v946
      %948 = vmatprep.subr.mxu0 %v947
      %v949 = vand.u32 %v285, 4294901760
      %v950 = vsub.f32 %v285, %v949
      %951 = vmatpush1.msra.mxu0 %v950
      %v952 = vand.u32 %v288, 4294901760
      %v953 = vsub.f32 %v288, %v952
      %954 = vmatprep.subr.mxu0 %v953
      %v955 = vand.u32 %v287, 4294901760
      %v956 = vsub.f32 %v287, %v955
      %957 = vmatpush1.msra.mxu0 %v956
      %v958 = vand.u32 %v290, 4294901760
      %v959 = vsub.f32 %v290, %v958
      %960 = vmatprep.subr.mxu0 %v959
      %v961 = vand.u32 %v289, 4294901760
      %v962 = vsub.f32 %v289, %v961
      %963 = vmatpush1.msra.mxu0 %v962
      %v964 = vand.u32 %v292, 4294901760
      %v965 = vsub.f32 %v292, %v964
      %966 = vmatprep.subr.mxu0 %v965
      %v967 = vand.u32 %v291, 4294901760
      %v968 = vsub.f32 %v291, %v967
      %969 = vmatpush1.msra.mxu0 %v968
      %v970 = vand.u32 %v294, 4294901760
      %v971 = vsub.f32 %v294, %v970
      %972 = vmatprep.subr.mxu0 %v971
      %v973 = vand.u32 %v293, 4294901760
      %v974 = vsub.f32 %v293, %v973
      %975 = vmatpush1.msra.mxu0 %v974
      %v976 = vand.u32 %v296, 4294901760
      %v977 = vsub.f32 %v296, %v976
      %978 = vmatprep.subr.mxu0 %v977
      %v979 = vand.u32 %v295, 4294901760
      %v980 = vsub.f32 %v295, %v979
      %981 = vmatpush1.msra.mxu0 %v980
      %v982 = vand.u32 %v298, 4294901760
      %v983 = vsub.f32 %v298, %v982
      %984 = vmatprep.subr.mxu0 %v983
      %v985 = vand.u32 %v297, 4294901760
      %v986 = vsub.f32 %v297, %v985
      %987 = vmatpush1.msra.mxu0 %v986
      %v988 = vand.u32 %v300, 4294901760
      %v989 = vsub.f32 %v300, %v988
      %990 = vmatprep.subr.mxu0 %v989
      %v991 = vand.u32 %v299, 4294901760
      %v992 = vsub.f32 %v299, %v991
      %993 = vmatpush1.msra.mxu0 %v992
      %v994 = vand.u32 %v302, 4294901760
      %v995 = vsub.f32 %v302, %v994
      %996 = vmatprep.subr.mxu0 %v995
      %v997 = vand.u32 %v301, 4294901760
      %v998 = vsub.f32 %v301, %v997
      %999 = vmatpush1.msra.mxu0 %v998
      %v1000 = vand.u32 %v304, 4294901760
      %v1001 = vsub.f32 %v304, %v1000
      %1002 = vmatprep.subr.mxu0 %v1001
      %v1003 = vand.u32 %v303, 4294901760
      %v1004 = vsub.f32 %v303, %v1003
      %1005 = vmatpush1.msra.mxu0 %v1004
      %v1006 = vand.u32 %v306, 4294901760
      %v1007 = vsub.f32 %v306, %v1006
      %1008 = vmatprep.subr.mxu0 %v1007
      %v1009 = vand.u32 %v305, 4294901760
      %v1010 = vsub.f32 %v305, %v1009
      %1011 = vmatpush1.msra.mxu0 %v1010
      %v1012 = vand.u32 %v308, 4294901760
      %v1013 = vsub.f32 %v308, %v1012
      %1014 = vmatprep.subr.mxu0 %v1013
      %v1015 = vand.u32 %v307, 4294901760
      %v1016 = vsub.f32 %v307, %v1015
      %1017 = vmatpush1.msra.mxu0 %v1016
      %v1018 = vand.u32 %v310, 4294901760
      %v1019 = vsub.f32 %v310, %v1018
      %1020 = vmatprep.subr.mxu0 %v1019
      %v1021 = vand.u32 %v309, 4294901760
      %v1022 = vsub.f32 %v309, %v1021
      %1023 = vmatpush1.msra.mxu0 %v1022
      %v1024 = vand.u32 %v312, 4294901760
      %v1025 = vsub.f32 %v312, %v1024
      %1026 = vmatprep.subr.mxu0 %v1025
      %v1027 = vand.u32 %v311, 4294901760
      %v1028 = vsub.f32 %v311, %v1027
      %1029 = vmatpush1.msra.mxu0 %v1028
      %v1030 = vand.u32 %v314, 4294901760
      %v1031 = vsub.f32 %v314, %v1030
      %1032 = vmatprep.subr.mxu0 %v1031
      %v1033 = vand.u32 %v313, 4294901760
      %v1034 = vsub.f32 %v313, %v1033
      %1035 = vmatpush1.msra.mxu0 %v1034
      %v1036 = vand.u32 %v316, 4294901760
      %v1037 = vsub.f32 %v316, %v1036
      %1038 = vmatprep.subr.mxu0 %v1037
      %v1039 = vand.u32 %v315, 4294901760
      %v1040 = vsub.f32 %v315, %v1039
      %1041 = vmatpush1.msra.mxu0 %v1040
      %v1042 = vand.u32 %v318, 4294901760
      %v1043 = vsub.f32 %v318, %v1042
      %1044 = vmatprep.subr.mxu0 %v1043
      %v1045 = vand.u32 %v317, 4294901760
      %v1046 = vsub.f32 %v317, %v1045
      %1047 = vmatpush1.msra.mxu0 %v1046
      %v1048 = vand.u32 %v320, 4294901760
      %v1049 = vsub.f32 %v320, %v1048
      %1050 = vmatprep.subr.mxu0 %v1049
      %v1051 = vand.u32 %v319, 4294901760
      %v1052 = vsub.f32 %v319, %v1051
      %1053 = vmatpush1.msra.mxu0 %v1052
      %v1054 = vand.u32 %v322, 4294901760
      %v1055 = vsub.f32 %v322, %v1054
      %1056 = vmatprep.subr.mxu0 %v1055
      %v1057 = vand.u32 %v321, 4294901760
      %v1058 = vsub.f32 %v321, %v1057
      %1059 = vmatpush1.msra.mxu0 %v1058
      %v1060 = vand.u32 %v324, 4294901760
      %v1061 = vsub.f32 %v324, %v1060
      %1062 = vmatprep.subr.mxu0 %v1061
      %v1063 = vand.u32 %v323, 4294901760
      %v1064 = vsub.f32 %v323, %v1063
      %1065 = vmatpush1.msra.mxu0 %v1064
      %v1066 = vand.u32 %v326, 4294901760
      %v1067 = vsub.f32 %v326, %v1066
      %1068 = vmatprep.subr.mxu0 %v1067
      %v1069 = vand.u32 %v325, 4294901760
      %v1070 = vsub.f32 %v325, %v1069
      %1071 = vmatpush1.msra.mxu0 %v1070
      %v1072 = vand.u32 %v328, 4294901760
      %v1073 = vsub.f32 %v328, %v1072
      %1074 = vmatprep.subr.mxu0 %v1073
      %v1075 = vand.u32 %v327, 4294901760
      %v1076 = vsub.f32 %v327, %v1075
      %1077 = vmatpush1.msra.mxu0 %v1076
      %v1078 = vand.u32 %v330, 4294901760
      %v1079 = vsub.f32 %v330, %v1078
      %1080 = vmatprep.subr.mxu0 %v1079
      %v1081 = vand.u32 %v329, 4294901760
      %v1082 = vsub.f32 %v329, %v1081
      %1083 = vmatpush1.msra.mxu0 %v1082
      %v1084 = vand.u32 %v332, 4294901760
      %v1085 = vsub.f32 %v332, %v1084
      %1086 = vmatprep.subr.mxu0 %v1085
      %v1087 = vand.u32 %v331, 4294901760
      %v1088 = vsub.f32 %v331, %v1087
      %1089 = vmatpush1.msra.mxu0 %v1088
      %v1090 = vand.u32 %v334, 4294901760
      %v1091 = vsub.f32 %v334, %v1090
      %1092 = vmatprep.subr.mxu0 %v1091
      %v1093 = vand.u32 %v333, 4294901760
      %v1094 = vsub.f32 %v333, %v1093
      %1095 = vmatpush1.msra.mxu0 %v1094
      %v1096 = vand.u32 %v336, 4294901760
      %v1097 = vsub.f32 %v336, %v1096
      %1098 = vmatprep.subr.mxu0 %v1097
      %v1099 = vand.u32 %v335, 4294901760
      %v1100 = vsub.f32 %v335, %v1099
      %1101 = vmatpush1.msra.mxu0 %v1100
      %v1102 = vand.u32 %v341, 4294901760
      %v1103 = vsub.f32 %v341, %v1102
      %1104 = vmatprep.mubr.f32.mxu0 %v1103
      %v1105 = vand.u32 %v340, 4294901760
      %v1106 = vsub.f32 %v340, %v1105
      %1107 = vmatmul.mubr.f32.gmra.mrb[0].mxu0 %v1106
      %v1108 = vpop.f32.mrb[0].mxu0
      %v1109 = vadd.f32 %v898, %v1108
      %v1110 = vpop.f32.mrb[0].mxu0
      %v1111 = vadd.f32 %v900, %v1110
      %v1112 = vand.u32 %v343, 4294901760
      %v1113 = vsub.f32 %v343, %v1112
      %1114 = vmatprep.mubr.f32.mxu0 %v1113
      %v1115 = vand.u32 %v342, 4294901760
      %v1116 = vsub.f32 %v342, %v1115
      %1117 = vmatmul.mubr.f32.gmra.mrb[0].mxu0 %v1116
      %v1118 = vpop.f32.mrb[0].mxu0
      %v1119 = vadd.f32 %v906, %v1118
      %v1120 = vpop.f32.mrb[0].mxu0
      %v1121 = vadd.f32 %v908, %v1120
      %1122 = vdwg.mxu0
      %v1123 = vand.u32 %v274, 4294901760
      %1124 = vmatprep.subr.mxu0 %v1123
      %v1125 = vand.u32 %v273, 4294901760
      %1126 = vmatpush1.msra.mxu0 %v1125
      %v1127 = vand.u32 %v276, 4294901760
      %1128 = vmatprep.subr.mxu0 %v1127
      %v1129 = vand.u32 %v275, 4294901760
      %1130 = vmatpush1.msra.mxu0 %v1129
      %v1131 = vand.u32 %v278, 4294901760
      %1132 = vmatprep.subr.mxu0 %v1131
      %v1133 = vand.u32 %v277, 4294901760
      %1134 = vmatpush1.msra.mxu0 %v1133
      %v1135 = vand.u32 %v280, 4294901760
      %1136 = vmatprep.subr.mxu0 %v1135
      %v1137 = vand.u32 %v279, 4294901760
      %1138 = vmatpush1.msra.mxu0 %v1137
      %v1139 = vand.u32 %v282, 4294901760
      %1140 = vmatprep.subr.mxu0 %v1139
      %v1141 = vand.u32 %v281, 4294901760
      %1142 = vmatpush1.msra.mxu0 %v1141
      %v1143 = vand.u32 %v284, 4294901760
      %1144 = vmatprep.subr.mxu0 %v1143
      %v1145 = vand.u32 %v283, 4294901760
      %1146 = vmatpush1.msra.mxu0 %v1145
      %v1147 = vand.u32 %v286, 4294901760
      %1148 = vmatprep.subr.mxu0 %v1147
      %v1149 = vand.u32 %v285, 4294901760
      %1150 = vmatpush1.msra.mxu0 %v1149
      %v1151 = vand.u32 %v288, 4294901760
      %1152 = vmatprep.subr.mxu0 %v1151
      %v1153 = vand.u32 %v287, 4294901760
      %1154 = vmatpush1.msra.mxu0 %v1153
      %v1155 = vand.u32 %v290, 4294901760
      %1156 = vmatprep.subr.mxu0 %v1155
      %v1157 = vand.u32 %v289, 4294901760
      %1158 = vmatpush1.msra.mxu0 %v1157
      %v1159 = vand.u32 %v292, 4294901760
      %1160 = vmatprep.subr.mxu0 %v1159
      %v1161 = vand.u32 %v291, 4294901760
      %1162 = vmatpush1.msra.mxu0 %v1161
      %v1163 = vand.u32 %v294, 4294901760
      %1164 = vmatprep.subr.mxu0 %v1163
      %v1165 = vand.u32 %v293, 4294901760
      %1166 = vmatpush1.msra.mxu0 %v1165
      %v1167 = vand.u32 %v296, 4294901760
      %1168 = vmatprep.subr.mxu0 %v1167
      %v1169 = vand.u32 %v295, 4294901760
      %1170 = vmatpush1.msra.mxu0 %v1169
      %v1171 = vand.u32 %v298, 4294901760
      %1172 = vmatprep.subr.mxu0 %v1171
      %v1173 = vand.u32 %v297, 4294901760
      %1174 = vmatpush1.msra.mxu0 %v1173
      %v1175 = vand.u32 %v300, 4294901760
      %1176 = vmatprep.subr.mxu0 %v1175
      %v1177 = vand.u32 %v299, 4294901760
      %1178 = vmatpush1.msra.mxu0 %v1177
      %v1179 = vand.u32 %v302, 4294901760
      %1180 = vmatprep.subr.mxu0 %v1179
      %v1181 = vand.u32 %v301, 4294901760
      %1182 = vmatpush1.msra.mxu0 %v1181
      %v1183 = vand.u32 %v304, 4294901760
      %1184 = vmatprep.subr.mxu0 %v1183
      %v1185 = vand.u32 %v303, 4294901760
      %1186 = vmatpush1.msra.mxu0 %v1185
      %v1187 = vand.u32 %v306, 4294901760
      %1188 = vmatprep.subr.mxu0 %v1187
      %v1189 = vand.u32 %v305, 4294901760
      %1190 = vmatpush1.msra.mxu0 %v1189
      %v1191 = vand.u32 %v308, 4294901760
      %1192 = vmatprep.subr.mxu0 %v1191
      %v1193 = vand.u32 %v307, 4294901760
      %1194 = vmatpush1.msra.mxu0 %v1193
      %v1195 = vand.u32 %v310, 4294901760
      %1196 = vmatprep.subr.mxu0 %v1195
      %v1197 = vand.u32 %v309, 4294901760
      %1198 = vmatpush1.msra.mxu0 %v1197
      %v1199 = vand.u32 %v312, 4294901760
      %1200 = vmatprep.subr.mxu0 %v1199
      %v1201 = vand.u32 %v311, 4294901760
      %1202 = vmatpush1.msra.mxu0 %v1201
      %v1203 = vand.u32 %v314, 4294901760
      %1204 = vmatprep.subr.mxu0 %v1203
      %v1205 = vand.u32 %v313, 4294901760
      %1206 = vmatpush1.msra.mxu0 %v1205
      %v1207 = vand.u32 %v316, 4294901760
      %1208 = vmatprep.subr.mxu0 %v1207
      %v1209 = vand.u32 %v315, 4294901760
      %1210 = vmatpush1.msra.mxu0 %v1209
      %v1211 = vand.u32 %v318, 4294901760
      %1212 = vmatprep.subr.mxu0 %v1211
      %v1213 = vand.u32 %v317, 4294901760
      %1214 = vmatpush1.msra.mxu0 %v1213
      %v1215 = vand.u32 %v320, 4294901760
      %1216 = vmatprep.subr.mxu0 %v1215
      %v1217 = vand.u32 %v319, 4294901760
      %1218 = vmatpush1.msra.mxu0 %v1217
      %v1219 = vand.u32 %v322, 4294901760
      %1220 = vmatprep.subr.mxu0 %v1219
      %v1221 = vand.u32 %v321, 4294901760
      %1222 = vmatpush1.msra.mxu0 %v1221
      %v1223 = vand.u32 %v324, 4294901760
      %1224 = vmatprep.subr.mxu0 %v1223
      %v1225 = vand.u32 %v323, 4294901760
      %1226 = vmatpush1.msra.mxu0 %v1225
      %v1227 = vand.u32 %v326, 4294901760
      %1228 = vmatprep.subr.mxu0 %v1227
      %v1229 = vand.u32 %v325, 4294901760
      %1230 = vmatpush1.msra.mxu0 %v1229
      %v1231 = vand.u32 %v328, 4294901760
      %1232 = vmatprep.subr.mxu0 %v1231
      %v1233 = vand.u32 %v327, 4294901760
      %1234 = vmatpush1.msra.mxu0 %v1233
      %v1235 = vand.u32 %v330, 4294901760
      %1236 = vmatprep.subr.mxu0 %v1235
      %v1237 = vand.u32 %v329, 4294901760
      %1238 = vmatpush1.msra.mxu0 %v1237
      %v1239 = vand.u32 %v332, 4294901760
      %1240 = vmatprep.subr.mxu0 %v1239
      %v1241 = vand.u32 %v331, 4294901760
      %1242 = vmatpush1.msra.mxu0 %v1241
      %v1243 = vand.u32 %v334, 4294901760
      %1244 = vmatprep.subr.mxu0 %v1243
      %v1245 = vand.u32 %v333, 4294901760
      %1246 = vmatpush1.msra.mxu0 %v1245
      %v1247 = vand.u32 %v336, 4294901760
      %1248 = vmatprep.subr.mxu0 %v1247
      %v1249 = vand.u32 %v335, 4294901760
      %1250 = vmatpush1.msra.mxu0 %v1249
      %v1251 = vand.u32 %v341, 4294901760
      %v1252 = vsub.f32 %v341, %v1251
      %v1253 = vand.u32 %v1252, 4294901760
      %1254 = vmatprep.mubr.f32.mxu0 %v1253
      %v1255 = vand.u32 %v340, 4294901760
      %v1256 = vsub.f32 %v340, %v1255
      %v1257 = vand.u32 %v1256, 4294901760
      %1258 = vmatmul.mubr.f32.gmra.mrb[0].mxu0 %v1257
      %v1259 = vpop.f32.mrb[0].mxu0
      %v1260 = vadd.f32 %v1109, %v1259
      %v1261 = vpop.f32.mrb[0].mxu0
      %v1262 = vadd.f32 %v1111, %v1261
      %v1263 = vand.u32 %v343, 4294901760
      %v1264 = vsub.f32 %v343, %v1263
      %v1265 = vand.u32 %v1264, 4294901760
      %1266 = vmatprep.mubr.f32.mxu0 %v1265
      %v1267 = vand.u32 %v342, 4294901760
      %v1268 = vsub.f32 %v342, %v1267
      %v1269 = vand.u32 %v1268, 4294901760
      %1270 = vmatmul.mubr.f32.gmra.mrb[0].mxu0 %v1269
      %v1271 = vpop.f32.mrb[0].mxu0
      %v1272 = vadd.f32 %v1119, %v1271
      %v1273 = vpop.f32.mrb[0].mxu0
      %v1274 = vadd.f32 %v1121, %v1273
      %1275 = vdwg.mxu0
      %v1276 = vand.u32 %v274, 4294901760
      %v1277 = vsub.f32 %v274, %v1276
      %v1278 = vand.u32 %v1277, 4294901760
      %1279 = vmatprep.subr.mxu0 %v1278
      %v1280 = vand.u32 %v273, 4294901760
      %v1281 = vsub.f32 %v273, %v1280
      %v1282 = vand.u32 %v1281, 4294901760
      %1283 = vmatpush1.msra.mxu0 %v1282
      %v1284 = vand.u32 %v276, 4294901760
      %v1285 = vsub.f32 %v276, %v1284
      %v1286 = vand.u32 %v1285, 4294901760
      %1287 = vmatprep.subr.mxu0 %v1286
      %v1288 = vand.u32 %v275, 4294901760
      %v1289 = vsub.f32 %v275, %v1288
      %v1290 = vand.u32 %v1289, 4294901760
      %1291 = vmatpush1.msra.mxu0 %v1290
      %v1292 = vand.u32 %v278, 4294901760
      %v1293 = vsub.f32 %v278, %v1292
      %v1294 = vand.u32 %v1293, 4294901760
      %1295 = vmatprep.subr.mxu0 %v1294
      %v1296 = vand.u32 %v277, 4294901760
      %v1297 = vsub.f32 %v277, %v1296
      %v1298 = vand.u32 %v1297, 4294901760
      %1299 = vmatpush1.msra.mxu0 %v1298
      %v1300 = vand.u32 %v280, 4294901760
      %v1301 = vsub.f32 %v280, %v1300
      %v1302 = vand.u32 %v1301, 4294901760
      %1303 = vmatprep.subr.mxu0 %v1302
      %v1304 = vand.u32 %v279, 4294901760
      %v1305 = vsub.f32 %v279, %v1304
      %v1306 = vand.u32 %v1305, 4294901760
      %1307 = vmatpush1.msra.mxu0 %v1306
      %v1308 = vand.u32 %v282, 4294901760
      %v1309 = vsub.f32 %v282, %v1308
      %v1310 = vand.u32 %v1309, 4294901760
      %1311 = vmatprep.subr.mxu0 %v1310
      %v1312 = vand.u32 %v281, 4294901760
      %v1313 = vsub.f32 %v281, %v1312
      %v1314 = vand.u32 %v1313, 4294901760
      %1315 = vmatpush1.msra.mxu0 %v1314
      %v1316 = vand.u32 %v284, 4294901760
      %v1317 = vsub.f32 %v284, %v1316
      %v1318 = vand.u32 %v1317, 4294901760
      %1319 = vmatprep.subr.mxu0 %v1318
      %v1320 = vand.u32 %v283, 4294901760
      %v1321 = vsub.f32 %v283, %v1320
      %v1322 = vand.u32 %v1321, 4294901760
      %1323 = vmatpush1.msra.mxu0 %v1322
      %v1324 = vand.u32 %v286, 4294901760
      %v1325 = vsub.f32 %v286, %v1324
      %v1326 = vand.u32 %v1325, 4294901760
      %1327 = vmatprep.subr.mxu0 %v1326
      %v1328 = vand.u32 %v285, 4294901760
      %v1329 = vsub.f32 %v285, %v1328
      %v1330 = vand.u32 %v1329, 4294901760
      %1331 = vmatpush1.msra.mxu0 %v1330
      %v1332 = vand.u32 %v288, 4294901760
      %v1333 = vsub.f32 %v288, %v1332
      %v1334 = vand.u32 %v1333, 4294901760
      %1335 = vmatprep.subr.mxu0 %v1334
      %v1336 = vand.u32 %v287, 4294901760
      %v1337 = vsub.f32 %v287, %v1336
      %v1338 = vand.u32 %v1337, 4294901760
      %1339 = vmatpush1.msra.mxu0 %v1338
      %v1340 = vand.u32 %v290, 4294901760
      %v1341 = vsub.f32 %v290, %v1340
      %v1342 = vand.u32 %v1341, 4294901760
      %1343 = vmatprep.subr.mxu0 %v1342
      %v1344 = vand.u32 %v289, 4294901760
      %v1345 = vsub.f32 %v289, %v1344
      %v1346 = vand.u32 %v1345, 4294901760
      %1347 = vmatpush1.msra.mxu0 %v1346
      %v1348 = vand.u32 %v292, 4294901760
      %v1349 = vsub.f32 %v292, %v1348
      %v1350 = vand.u32 %v1349, 4294901760
      %1351 = vmatprep.subr.mxu0 %v1350
      %v1352 = vand.u32 %v291, 4294901760
      %v1353 = vsub.f32 %v291, %v1352
      %v1354 = vand.u32 %v1353, 4294901760
      %1355 = vmatpush1.msra.mxu0 %v1354
      %v1356 = vand.u32 %v294, 4294901760
      %v1357 = vsub.f32 %v294, %v1356
      %v1358 = vand.u32 %v1357, 4294901760
      %1359 = vmatprep.subr.mxu0 %v1358
      %v1360 = vand.u32 %v293, 4294901760
      %v1361 = vsub.f32 %v293, %v1360
      %v1362 = vand.u32 %v1361, 4294901760
      %1363 = vmatpush1.msra.mxu0 %v1362
      %v1364 = vand.u32 %v296, 4294901760
      %v1365 = vsub.f32 %v296, %v1364
      %v1366 = vand.u32 %v1365, 4294901760
      %1367 = vmatprep.subr.mxu0 %v1366
      %v1368 = vand.u32 %v295, 4294901760
      %v1369 = vsub.f32 %v295, %v1368
      %v1370 = vand.u32 %v1369, 4294901760
      %1371 = vmatpush1.msra.mxu0 %v1370
      %v1372 = vand.u32 %v298, 4294901760
      %v1373 = vsub.f32 %v298, %v1372
      %v1374 = vand.u32 %v1373, 4294901760
      %1375 = vmatprep.subr.mxu0 %v1374
      %v1376 = vand.u32 %v297, 4294901760
      %v1377 = vsub.f32 %v297, %v1376
      %v1378 = vand.u32 %v1377, 4294901760
      %1379 = vmatpush1.msra.mxu0 %v1378
      %v1380 = vand.u32 %v300, 4294901760
      %v1381 = vsub.f32 %v300, %v1380
      %v1382 = vand.u32 %v1381, 4294901760
      %1383 = vmatprep.subr.mxu0 %v1382
      %v1384 = vand.u32 %v299, 4294901760
      %v1385 = vsub.f32 %v299, %v1384
      %v1386 = vand.u32 %v1385, 4294901760
      %1387 = vmatpush1.msra.mxu0 %v1386
      %v1388 = vand.u32 %v302, 4294901760
      %v1389 = vsub.f32 %v302, %v1388
      %v1390 = vand.u32 %v1389, 4294901760
      %1391 = vmatprep.subr.mxu0 %v1390
      %v1392 = vand.u32 %v301, 4294901760
      %v1393 = vsub.f32 %v301, %v1392
      %v1394 = vand.u32 %v1393, 4294901760
      %1395 = vmatpush1.msra.mxu0 %v1394
      %v1396 = vand.u32 %v304, 4294901760
      %v1397 = vsub.f32 %v304, %v1396
      %v1398 = vand.u32 %v1397, 4294901760
      %1399 = vmatprep.subr.mxu0 %v1398
      %v1400 = vand.u32 %v303, 4294901760
      %v1401 = vsub.f32 %v303, %v1400
      %v1402 = vand.u32 %v1401, 4294901760
      %1403 = vmatpush1.msra.mxu0 %v1402
      %v1404 = vand.u32 %v306, 4294901760
      %v1405 = vsub.f32 %v306, %v1404
      %v1406 = vand.u32 %v1405, 4294901760
      %1407 = vmatprep.subr.mxu0 %v1406
      %v1408 = vand.u32 %v305, 4294901760
      %v1409 = vsub.f32 %v305, %v1408
      %v1410 = vand.u32 %v1409, 4294901760
      %1411 = vmatpush1.msra.mxu0 %v1410
      %v1412 = vand.u32 %v308, 4294901760
      %v1413 = vsub.f32 %v308, %v1412
      %v1414 = vand.u32 %v1413, 4294901760
      %1415 = vmatprep.subr.mxu0 %v1414
      %v1416 = vand.u32 %v307, 4294901760
      %v1417 = vsub.f32 %v307, %v1416
      %v1418 = vand.u32 %v1417, 4294901760
      %1419 = vmatpush1.msra.mxu0 %v1418
      %v1420 = vand.u32 %v310, 4294901760
      %v1421 = vsub.f32 %v310, %v1420
      %v1422 = vand.u32 %v1421, 4294901760
      %1423 = vmatprep.subr.mxu0 %v1422
      %v1424 = vand.u32 %v309, 4294901760
      %v1425 = vsub.f32 %v309, %v1424
      %v1426 = vand.u32 %v1425, 4294901760
      %1427 = vmatpush1.msra.mxu0 %v1426
      %v1428 = vand.u32 %v312, 4294901760
      %v1429 = vsub.f32 %v312, %v1428
      %v1430 = vand.u32 %v1429, 4294901760
      %1431 = vmatprep.subr.mxu0 %v1430
      %v1432 = vand.u32 %v311, 4294901760
      %v1433 = vsub.f32 %v311, %v1432
      %v1434 = vand.u32 %v1433, 4294901760
      %1435 = vmatpush1.msra.mxu0 %v1434
      %v1436 = vand.u32 %v314, 4294901760
      %v1437 = vsub.f32 %v314, %v1436
      %v1438 = vand.u32 %v1437, 4294901760
      %1439 = vmatprep.subr.mxu0 %v1438
      %v1440 = vand.u32 %v313, 4294901760
      %v1441 = vsub.f32 %v313, %v1440
      %v1442 = vand.u32 %v1441, 4294901760
      %1443 = vmatpush1.msra.mxu0 %v1442
      %v1444 = vand.u32 %v316, 4294901760
      %v1445 = vsub.f32 %v316, %v1444
      %v1446 = vand.u32 %v1445, 4294901760
      %1447 = vmatprep.subr.mxu0 %v1446
      %v1448 = vand.u32 %v315, 4294901760
      %v1449 = vsub.f32 %v315, %v1448
      %v1450 = vand.u32 %v1449, 4294901760
      %1451 = vmatpush1.msra.mxu0 %v1450
      %v1452 = vand.u32 %v318, 4294901760
      %v1453 = vsub.f32 %v318, %v1452
      %v1454 = vand.u32 %v1453, 4294901760
      %1455 = vmatprep.subr.mxu0 %v1454
      %v1456 = vand.u32 %v317, 4294901760
      %v1457 = vsub.f32 %v317, %v1456
      %v1458 = vand.u32 %v1457, 4294901760
      %1459 = vmatpush1.msra.mxu0 %v1458
      %v1460 = vand.u32 %v320, 4294901760
      %v1461 = vsub.f32 %v320, %v1460
      %v1462 = vand.u32 %v1461, 4294901760
      %1463 = vmatprep.subr.mxu0 %v1462
      %v1464 = vand.u32 %v319, 4294901760
      %v1465 = vsub.f32 %v319, %v1464
      %v1466 = vand.u32 %v1465, 4294901760
      %1467 = vmatpush1.msra.mxu0 %v1466
      %v1468 = vand.u32 %v322, 4294901760
      %v1469 = vsub.f32 %v322, %v1468
      %v1470 = vand.u32 %v1469, 4294901760
      %1471 = vmatprep.subr.mxu0 %v1470
      %v1472 = vand.u32 %v321, 4294901760
      %v1473 = vsub.f32 %v321, %v1472
      %v1474 = vand.u32 %v1473, 4294901760
      %1475 = vmatpush1.msra.mxu0 %v1474
      %v1476 = vand.u32 %v324, 4294901760
      %v1477 = vsub.f32 %v324, %v1476
      %v1478 = vand.u32 %v1477, 4294901760
      %1479 = vmatprep.subr.mxu0 %v1478
      %v1480 = vand.u32 %v323, 4294901760
      %v1481 = vsub.f32 %v323, %v1480
      %v1482 = vand.u32 %v1481, 4294901760
      %1483 = vmatpush1.msra.mxu0 %v1482
      %v1484 = vand.u32 %v326, 4294901760
      %v1485 = vsub.f32 %v326, %v1484
      %v1486 = vand.u32 %v1485, 4294901760
      %1487 = vmatprep.subr.mxu0 %v1486
      %v1488 = vand.u32 %v325, 4294901760
      %v1489 = vsub.f32 %v325, %v1488
      %v1490 = vand.u32 %v1489, 4294901760
      %1491 = vmatpush1.msra.mxu0 %v1490
      %v1492 = vand.u32 %v328, 4294901760
      %v1493 = vsub.f32 %v328, %v1492
      %v1494 = vand.u32 %v1493, 4294901760
      %1495 = vmatprep.subr.mxu0 %v1494
      %v1496 = vand.u32 %v327, 4294901760
      %v1497 = vsub.f32 %v327, %v1496
      %v1498 = vand.u32 %v1497, 4294901760
      %1499 = vmatpush1.msra.mxu0 %v1498
      %v1500 = vand.u32 %v330, 4294901760
      %v1501 = vsub.f32 %v330, %v1500
      %v1502 = vand.u32 %v1501, 4294901760
      %1503 = vmatprep.subr.mxu0 %v1502
      %v1504 = vand.u32 %v329, 4294901760
      %v1505 = vsub.f32 %v329, %v1504
      %v1506 = vand.u32 %v1505, 4294901760
      %1507 = vmatpush1.msra.mxu0 %v1506
      %v1508 = vand.u32 %v332, 4294901760
      %v1509 = vsub.f32 %v332, %v1508
      %v1510 = vand.u32 %v1509, 4294901760
      %1511 = vmatprep.subr.mxu0 %v1510
      %v1512 = vand.u32 %v331, 4294901760
      %v1513 = vsub.f32 %v331, %v1512
      %v1514 = vand.u32 %v1513, 4294901760
      %1515 = vmatpush1.msra.mxu0 %v1514
      %v1516 = vand.u32 %v334, 4294901760
      %v1517 = vsub.f32 %v334, %v1516
      %v1518 = vand.u32 %v1517, 4294901760
      %1519 = vmatprep.subr.mxu0 %v1518
      %v1520 = vand.u32 %v333, 4294901760
      %v1521 = vsub.f32 %v333, %v1520
      %v1522 = vand.u32 %v1521, 4294901760
      %1523 = vmatpush1.msra.mxu0 %v1522
      %v1524 = vand.u32 %v336, 4294901760
      %v1525 = vsub.f32 %v336, %v1524
      %v1526 = vand.u32 %v1525, 4294901760
      %1527 = vmatprep.subr.mxu0 %v1526
      %v1528 = vand.u32 %v335, 4294901760
      %v1529 = vsub.f32 %v335, %v1528
      %v1530 = vand.u32 %v1529, 4294901760
      %1531 = vmatpush1.msra.mxu0 %v1530
      %v1532 = vand.u32 %v341, 4294901760
      %1533 = vmatprep.mubr.f32.mxu0 %v1532
      %v1534 = vand.u32 %v340, 4294901760
      %1535 = vmatmul.mubr.f32.gmra.mrb[0].mxu0 %v1534
      %v1536 = vpop.f32.mrb[0].mxu0
      %v1537 = vadd.f32 %v1260, %v1536
      %v1538 = vpop.f32.mrb[0].mxu0
      %v1539 = vadd.f32 %v1262, %v1538
      %v1540 = vand.u32 %v343, 4294901760
      %1541 = vmatprep.mubr.f32.mxu0 %v1540
      %v1542 = vand.u32 %v342, 4294901760
      %1543 = vmatmul.mubr.f32.gmra.mrb[0].mxu0 %v1542
      %v1544 = vpop.f32.mrb[0].mxu0
      %v1545 = vadd.f32 %v1272, %v1544
      %v1546 = vpop.f32.mrb[0].mxu0
      %v1547 = vadd.f32 %v1274, %v1546
      %1548 = vdwg.mxu0
      %v1549 = vand.u32 %v274, 4294901760
      %1550 = vmatprep.subr.mxu0 %v1549
      %v1551 = vand.u32 %v273, 4294901760
      %1552 = vmatpush1.msra.mxu0 %v1551
      %v1553 = vand.u32 %v276, 4294901760
      %1554 = vmatprep.subr.mxu0 %v1553
      %v1555 = vand.u32 %v275, 4294901760
      %1556 = vmatpush1.msra.mxu0 %v1555
      %v1557 = vand.u32 %v278, 4294901760
      %1558 = vmatprep.subr.mxu0 %v1557
      %v1559 = vand.u32 %v277, 4294901760
      %1560 = vmatpush1.msra.mxu0 %v1559
      %v1561 = vand.u32 %v280, 4294901760
      %1562 = vmatprep.subr.mxu0 %v1561
      %v1563 = vand.u32 %v279, 4294901760
      %1564 = vmatpush1.msra.mxu0 %v1563
      %v1565 = vand.u32 %v282, 4294901760
      %1566 = vmatprep.subr.mxu0 %v1565
      %v1567 = vand.u32 %v281, 4294901760
      %1568 = vmatpush1.msra.mxu0 %v1567
      %v1569 = vand.u32 %v284, 4294901760
      %1570 = vmatprep.subr.mxu0 %v1569
      %v1571 = vand.u32 %v283, 4294901760
      %1572 = vmatpush1.msra.mxu0 %v1571
      %v1573 = vand.u32 %v286, 4294901760
      %1574 = vmatprep.subr.mxu0 %v1573
      %v1575 = vand.u32 %v285, 4294901760
      %1576 = vmatpush1.msra.mxu0 %v1575
      %v1577 = vand.u32 %v288, 4294901760
      %1578 = vmatprep.subr.mxu0 %v1577
      %v1579 = vand.u32 %v287, 4294901760
      %1580 = vmatpush1.msra.mxu0 %v1579
      %v1581 = vand.u32 %v290, 4294901760
      %1582 = vmatprep.subr.mxu0 %v1581
      %v1583 = vand.u32 %v289, 4294901760
      %1584 = vmatpush1.msra.mxu0 %v1583
      %v1585 = vand.u32 %v292, 4294901760
      %1586 = vmatprep.subr.mxu0 %v1585
      %v1587 = vand.u32 %v291, 4294901760
      %1588 = vmatpush1.msra.mxu0 %v1587
      %v1589 = vand.u32 %v294, 4294901760
      %1590 = vmatprep.subr.mxu0 %v1589
      %v1591 = vand.u32 %v293, 4294901760
      %1592 = vmatpush1.msra.mxu0 %v1591
      %v1593 = vand.u32 %v296, 4294901760
      %1594 = vmatprep.subr.mxu0 %v1593
      %v1595 = vand.u32 %v295, 4294901760
      %1596 = vmatpush1.msra.mxu0 %v1595
      %v1597 = vand.u32 %v298, 4294901760
      %1598 = vmatprep.subr.mxu0 %v1597
      %v1599 = vand.u32 %v297, 4294901760
      %1600 = vmatpush1.msra.mxu0 %v1599
      %v1601 = vand.u32 %v300, 4294901760
      %1602 = vmatprep.subr.mxu0 %v1601
      %v1603 = vand.u32 %v299, 4294901760
      %1604 = vmatpush1.msra.mxu0 %v1603
      %v1605 = vand.u32 %v302, 4294901760
      %1606 = vmatprep.subr.mxu0 %v1605
      %v1607 = vand.u32 %v301, 4294901760
      %1608 = vmatpush1.msra.mxu0 %v1607
      %v1609 = vand.u32 %v304, 4294901760
      %1610 = vmatprep.subr.mxu0 %v1609
      %v1611 = vand.u32 %v303, 4294901760
      %1612 = vmatpush1.msra.mxu0 %v1611
      %v1613 = vand.u32 %v306, 4294901760
      %1614 = vmatprep.subr.mxu0 %v1613
      %v1615 = vand.u32 %v305, 4294901760
      %1616 = vmatpush1.msra.mxu0 %v1615
      %v1617 = vand.u32 %v308, 4294901760
      %1618 = vmatprep.subr.mxu0 %v1617
      %v1619 = vand.u32 %v307, 4294901760
      %1620 = vmatpush1.msra.mxu0 %v1619
      %v1621 = vand.u32 %v310, 4294901760
      %1622 = vmatprep.subr.mxu0 %v1621
      %v1623 = vand.u32 %v309, 4294901760
      %1624 = vmatpush1.msra.mxu0 %v1623
      %v1625 = vand.u32 %v312, 4294901760
      %1626 = vmatprep.subr.mxu0 %v1625
      %v1627 = vand.u32 %v311, 4294901760
      %1628 = vmatpush1.msra.mxu0 %v1627
      %v1629 = vand.u32 %v314, 4294901760
      %1630 = vmatprep.subr.mxu0 %v1629
      %v1631 = vand.u32 %v313, 4294901760
      %1632 = vmatpush1.msra.mxu0 %v1631
      %v1633 = vand.u32 %v316, 4294901760
      %1634 = vmatprep.subr.mxu0 %v1633
      %v1635 = vand.u32 %v315, 4294901760
      %1636 = vmatpush1.msra.mxu0 %v1635
      %v1637 = vand.u32 %v318, 4294901760
      %1638 = vmatprep.subr.mxu0 %v1637
      %v1639 = vand.u32 %v317, 4294901760
      %1640 = vmatpush1.msra.mxu0 %v1639
      %v1641 = vand.u32 %v320, 4294901760
      %1642 = vmatprep.subr.mxu0 %v1641
      %v1643 = vand.u32 %v319, 4294901760
      %1644 = vmatpush1.msra.mxu0 %v1643
      %v1645 = vand.u32 %v322, 4294901760
      %1646 = vmatprep.subr.mxu0 %v1645
      %v1647 = vand.u32 %v321, 4294901760
      %1648 = vmatpush1.msra.mxu0 %v1647
      %v1649 = vand.u32 %v324, 4294901760
      %1650 = vmatprep.subr.mxu0 %v1649
      %v1651 = vand.u32 %v323, 4294901760
      %1652 = vmatpush1.msra.mxu0 %v1651
      %v1653 = vand.u32 %v326, 4294901760
      %1654 = vmatprep.subr.mxu0 %v1653
      %v1655 = vand.u32 %v325, 4294901760
      %1656 = vmatpush1.msra.mxu0 %v1655
      %v1657 = vand.u32 %v328, 4294901760
      %1658 = vmatprep.subr.mxu0 %v1657
      %v1659 = vand.u32 %v327, 4294901760
      %1660 = vmatpush1.msra.mxu0 %v1659
      %v1661 = vand.u32 %v330, 4294901760
      %1662 = vmatprep.subr.mxu0 %v1661
      %v1663 = vand.u32 %v329, 4294901760
      %1664 = vmatpush1.msra.mxu0 %v1663
      %v1665 = vand.u32 %v332, 4294901760
      %1666 = vmatprep.subr.mxu0 %v1665
      %v1667 = vand.u32 %v331, 4294901760
      %1668 = vmatpush1.msra.mxu0 %v1667
      %v1669 = vand.u32 %v334, 4294901760
      %1670 = vmatprep.subr.mxu0 %v1669
      %v1671 = vand.u32 %v333, 4294901760
      %1672 = vmatpush1.msra.mxu0 %v1671
      %v1673 = vand.u32 %v336, 4294901760
      %1674 = vmatprep.subr.mxu0 %v1673
      %v1675 = vand.u32 %v335, 4294901760
      %1676 = vmatpush1.msra.mxu0 %v1675
      %v1677 = vand.u32 %v341, 4294901760
      %1678 = vmatprep.mubr.f32.mxu0 %v1677
      %v1679 = vand.u32 %v340, 4294901760
      %1680 = vmatmul.mubr.f32.gmra.mrb[0].mxu0 %v1679
      %v1681 = vpop.f32.mrb[0].mxu0
      %v1682 = vadd.f32 %v1537, %v1681
      %v1683 = vpop.f32.mrb[0].mxu0
      %v1684 = vadd.f32 %v1539, %v1683
      %v1685 = vand.u32 %v343, 4294901760
      %1686 = vmatprep.mubr.f32.mxu0 %v1685
      %v1687 = vand.u32 %v342, 4294901760
      %1688 = vmatmul.mubr.f32.gmra.mrb[0].mxu0 %v1687
      %v1689 = vpop.f32.mrb[0].mxu0
      %v1690 = vadd.f32 %v1545, %v1689
      %v1691 = vpop.f32.mrb[0].mxu0
      %v1692 = vadd.f32 %v1547, %v1691
      %1693 = vdwg.mxu0
      %v1694 = vadd.f32 %v344, %v1682
      %v1695 = vadd.f32 %v345, %v1684
      %v1696 = vadd.f32 %v346, %v1690
      %v1697 = vadd.f32 %v347, %v1692
      %1698 = vst [vmem:[#allocation2] sm:$0xff] %v1694
      %1699 = vst [vmem:[#allocation2 + $0x8] sm:$0xff] %v1695
      %1700 = vst [vmem:[#allocation2 + $0x10] sm:$0xff] %v1696
      %1701 = vst [vmem:[#allocation2 + $0x18] sm:$0xff] %v1697
    $region29: #{tpu_custom_call.1} parent=1 // pred_fallthru
      _
    // Predicated region
    $region30: #{tpu_custom_call.1} parent=1 // pred_check
      %p1702 = pneg %p50
    $region31: #{tpu_custom_call.1} parent=1 // pred_check_branch
      %1704 = sbr.rel (%p1702) target = $region33
    $region32: #{tpu_custom_call.1} parent=1 // pred_region
      %v1705 = vld [vmem:[#allocation2] sm:$0xff]
      %v1706 = vld [vmem:[#allocation2 + $0x8] sm:$0xff]
      %v1707 = vld [vmem:[#allocation2 + $0x10] sm:$0xff]
      %v1708 = vld [vmem:[#allocation2 + $0x18] sm:$0xff]
      %1709 = vst [vmem:[#allocation10] sm:$0xff] %v1705
      %1710 = vst [vmem:[#allocation10 + $0x8] sm:$0xff] %v1706
      %1711 = vst [vmem:[#allocation10 + $0x10] sm:$0xff] %v1707
      %1712 = vst [vmem:[#allocation10 + $0x18] sm:$0xff] %v1708
    $region33: #{tpu_custom_call.1} parent=1 // pred_fallthru
      _
    // Predicated region
    $region34: #{tpu_custom_call.1} parent=1 // pred_check
      _
    $region35: #{tpu_custom_call.1} parent=1 // pred_check_branch
      %1714 = sbr.rel (0) target = $region37
    $region36: #{tpu_custom_call.1} parent=1 // pred_region
      %s1716 = ssub.s32 512, 512
      %1717 = vsyncadd [#allocation7], %s1716
      %s1718 = sshll.u32 [#allocation10], 4
      %s1719 = int_to_ptr.vmem [resolvable:$true] %s1718
      %1724 = dma.vmem_to_hbm [thread:$0]  %s1719, 512, %s4, [#allocation7], 256, 256, 16
    $region37: #{tpu_custom_call.1} parent=1 // pred_fallthru
      _
    // Predicated region
    $region38: #{tpu_custom_call.1} parent=1 // pred_check
      _
    $region39: #{tpu_custom_call.1} parent=1 // pred_check_branch
      %1726 = sbr.rel (0) target = $region41
    $region40: #{tpu_custom_call.1} parent=1 // pred_region
      %1727 = dma.done [#allocation7], 512
    $region41: #{tpu_custom_call.1} parent=1 // pred_fallthru
      _
    %1728 = vsyncpa [#allocation6], 1
    %1729 = vsyncpa [#allocation9], 1
    %1730 = vsyncpa [#allocation7], 1

</llo_original>
